<compile_context>
chip_gen: v6e
topology: v6e:2x2x1
jax: 0.10.0
libtpu: 0.0.40
codegen_flags: <defaults>
</compile_context>

<pallas_src>
import jax
import jax.numpy as jnp
import numpy as np
from jax.experimental import pallas as pl
from jax.experimental.pallas import tpu as pltpu

# --- hyperparameters the PyTorch module references as globals -------------
d_w = 32            # embedding dim
d_h = 32            # LSTM hidden dim
bidirectional = False
layer_num = 1
class_num = 4
drop_out_rate = 0.0  # dropout is identity at inference (and with 1 layer)
vocab_size = 50


def lstm_attn_kernel(emb_ref, lens_ref, wih_ref, whh_ref, b_ref,
                     wq_ref, bq_ref, wo_ref, bo_ref,
                     out_ref,
                     gin_sc):
    """LSTM recurrence + online-softmax attention pooling + classifier.

    Gate column layout of wih/whh/b is [i | f | o | g] (pre-permuted in the
    wrapper) so sigmoid is applied once to a contiguous 3*d_h slab.
    """
    T, Bb, _ = emb_ref.shape
    D = whh_ref.shape[0]

    # ---- hoisted input projection: independent of h, off the critical path.
    # TODO(synk): could be a single (T*Bb, d_w) @ (d_w, 4*d_h) matmul if the
    # leading-dim reshape is guaranteed to lower; per-step pushes are already
    # off the serial dependency chain and pipeline freely on the MXU.
    wih = wih_ref[...]
    bias = b_ref[...]
    for t in range(T):
        gin_sc[t] = (jnp.dot(emb_ref[t], wih,
                             preferred_element_type=jnp.float32) + bias)

    # ---- hoisted loop-invariant reads --------------------------------------
    whh = whh_ref[...]          # (d_h, 4*d_h) -- 4 vregs, stays resident
    wq = wq_ref[...]            # (1, d_h)
    bq = bq_ref[...]            # (1, 1)
    lens_v = lens_ref[...]      # (Bb, 1) int32

    h = jnp.zeros((Bb, D), jnp.float32)
    c = jnp.zeros((Bb, D), jnp.float32)
    # online-softmax accumulators for the attention over time
    m_run = jnp.full((Bb, 1), -1e30, jnp.float32)
    l_run = jnp.zeros((Bb, 1), jnp.float32)
    ctx = jnp.zeros((Bb, D), jnp.float32)

    # ---- fully unrolled recurrence (T is small & static) -------------------
    for t in range(T):
        gates = gin_sc[t] + jnp.dot(h, whh, preferred_element_type=jnp.float32)
        sfo = jax.nn.sigmoid(gates[:, :3 * D])        # i, f, o in one launch
        i_g = sfo[:, 0 * D:1 * D]
        f_g = sfo[:, 1 * D:2 * D]
        o_g = sfo[:, 2 * D:3 * D]
        g_g = jnp.tanh(gates[:, 3 * D:4 * D])
        c_new = f_g * c + i_g * g_g
        h_new = o_g * jnp.tanh(c_new)

        valid = t < lens_v                            # (Bb, 1) bool
        h = jnp.where(valid, h_new, h)                # freeze state when padded
        c = jnp.where(valid, c_new, c)
        out_t = jnp.where(valid, h_new, 0.0)          # padded outputs are zero

        # attention score for this step + online softmax over the time axis
        score = jnp.sum(out_t * wq, axis=-1, keepdims=True) + bq   # (Bb, 1)
        m_new = jnp.maximum(m_run, score)
        a = jnp.exp(m_run - m_new)
        p = jnp.exp(score - m_new)
        l_run = a * l_run + p
        ctx = a * ctx + p * out_t
        m_run = m_new

    ctx = ctx / l_run                                 # softmax-normalised context

    logits = (jnp.dot(ctx, wo_ref[...], preferred_element_type=jnp.float32)
              + bo_ref[...])                          # (Bb, class_num)
    lmax = jnp.max(logits, axis=-1, keepdims=True)
    lse = lmax + jnp.log(jnp.sum(jnp.exp(logits - lmax), axis=-1, keepdims=True))
    out_ref[...] = logits - lse                       # log-softmax


def _permute_gates(w):
    """PyTorch gate order [i, f, g, o] -> kernel order [i, f, o, g] (last axis)."""
    i, f, g, o = jnp.split(w, 4, axis=-1)
    return jnp.concatenate([i, f, o, g], axis=-1)


def _round_up(x, m):
    return (x + m - 1) // m * m


def lstm_forward(x_ids, lens, params, *, block_b=128):
    (emb_table, wih_t, whh_t, b_all, wq, bq, wo_t, bo) = params
    B, T = x_ids.shape

    # gate-column permutation so the kernel activates i/f/o with one sigmoid
    wih_p = _permute_gates(wih_t)
    whh_p = _permute_gates(whh_t)
    b_p = _permute_gates(b_all)

    # glue: embedding gather + time-major layout
    embedded = emb_table[x_ids]                          # (B, T, d_w)
    emb_tm = jnp.transpose(embedded, (1, 0, 2))          # (T, B, d_w)

    # pad batch to a sublane-friendly tile; padded rows get lens = 0
    bb = min(block_b, _round_up(B, 8))
    Bp = _round_up(B, bb)
    lens = jnp.asarray(lens, jnp.int32)
    if Bp != B:
        emb_tm = jnp.pad(emb_tm, ((0, 0), (0, Bp - B), (0, 0)))
        lens = jnp.pad(lens, (0, Bp - B))
    lens_2d = lens[:, None]                              # (Bp, 1) int32

    grid = (Bp // bb,)
    out = pl.pallas_call(
        lstm_attn_kernel,
        out_shape=jax.ShapeDtypeStruct((Bp, class_num), jnp.float32),
        grid_spec=pltpu.PrefetchScalarGridSpec(
            num_scalar_prefetch=0,
            grid=grid,
            in_specs=[
                pl.BlockSpec((T, bb, d_w), lambda i: (0, i, 0)),     # embeddings
                pl.BlockSpec((bb, 1), lambda i: (i, 0)),             # lens
                pl.BlockSpec((d_w, 4 * d_h), lambda i: (0, 0)),      # W_ih^T
                pl.BlockSpec((d_h, 4 * d_h), lambda i: (0, 0)),      # W_hh^T
                pl.BlockSpec((1, 4 * d_h), lambda i: (0, 0)),        # b_ih+b_hh
                pl.BlockSpec((1, d_h), lambda i: (0, 0)),            # query w
                pl.BlockSpec((1, 1), lambda i: (0, 0)),              # query b
                pl.BlockSpec((d_h, class_num), lambda i: (0, 0)),    # W_out^T
                pl.BlockSpec((1, class_num), lambda i: (0, 0)),      # b_out
            ],
            out_specs=pl.BlockSpec((bb, class_num), lambda i: (i, 0)),
            scratch_shapes=[pltpu.VMEM((T, bb, 4 * d_h), jnp.float32)],
        ),
        compiler_params=pltpu.CompilerParams(
            dimension_semantics=("parallel",)),
    )(emb_tm, lens_2d, wih_p, whh_p, b_p, wq, bq, wo_t, bo)
    return out[:B]


def reference_forward(x_ids, lens, params):
    """Pure-JAX reference with identical semantics (for a correctness check)."""
    (emb_table, wih_t, whh_t, b_all, wq, bq, wo_t, bo) = params
    B, T = x_ids.shape
    emb = emb_table[x_ids]
    h = jnp.zeros((B, d_h), jnp.float32)
    c = jnp.zeros((B, d_h), jnp.float32)
    outs = []
    for t in range(T):
        m = (t < lens).astype(jnp.float32)[:, None]
        gates = emb[:, t] @ wih_t + h @ whh_t + b_all
        i_g = jax.nn.sigmoid(gates[:, :d_h])
        f_g = jax.nn.sigmoid(gates[:, d_h:2 * d_h])
        g_g = jnp.tanh(gates[:, 2 * d_h:3 * d_h])
        o_g = jax.nn.sigmoid(gates[:, 3 * d_h:])
        c_new = f_g * c + i_g * g_g
        h_new = o_g * jnp.tanh(c_new)
        h = m * h_new + (1 - m) * h
        c = m * c_new + (1 - m) * c
        outs.append(m * h_new)
    out = jnp.stack(outs, axis=1)                              # (B, T, d_h)
    score = out @ wq[0] + bq[0, 0]                             # (B, T)
    p = jax.nn.softmax(score, axis=-1)
    ctx = jnp.einsum('bt,btd->bd', p, out)
    logits = ctx @ wo_t + bo
    return jax.nn.log_softmax(logits, axis=-1)


def init_params(key):
    ks = jax.random.split(key, 8)
    k_lstm = 1.0 / np.sqrt(d_h)
    emb_table = jax.random.normal(ks[0], (vocab_size, d_w), jnp.float32)
    wih_t = jax.random.uniform(ks[1], (d_w, 4 * d_h), jnp.float32, -k_lstm, k_lstm)
    whh_t = jax.random.uniform(ks[2], (d_h, 4 * d_h), jnp.float32, -k_lstm, k_lstm)
    b_ih = jax.random.uniform(ks[3], (4 * d_h,), jnp.float32, -k_lstm, k_lstm)
    b_hh = jax.random.uniform(ks[4], (4 * d_h,), jnp.float32, -k_lstm, k_lstm)
    b_all = (b_ih + b_hh).reshape(1, 4 * d_h)
    wq = jax.random.uniform(ks[5], (1, d_h), jnp.float32, -k_lstm, k_lstm)
    bq = jnp.full((1, 1), 0.01, jnp.float32)
    wo_t = jax.random.uniform(ks[6], (d_h, class_num), jnp.float32, -k_lstm, k_lstm)
    bo = jax.random.uniform(ks[7], (1, class_num), jnp.float32, -k_lstm, k_lstm)
    return (emb_table, wih_t, whh_t, b_all, wq, bq, wo_t, bo)


if __name__ == "__main__":
    B, T = 2, 8
    key = jax.random.PRNGKey(0)
    k_in, k_par = jax.random.split(key)
    x_ids = jax.random.randint(k_in, (B, T), 0, vocab_size, dtype=jnp.int32)
    lens = jnp.array([8, 5], dtype=jnp.int32)   # descending (enforce_sorted=True)
    params = init_params(jax.random.PRNGKey(777))

    out = jax.block_until_ready(lstm_forward(x_ids, lens, params))
    ref = jax.block_until_ready(reference_forward(x_ids, lens, params))
    np.testing.assert_allclose(np.asarray(out), np.asarray(ref),
                               rtol=1e-4, atol=1e-5)
    assert out.shape == (B, class_num)
    print("KERNEL_OK")
</pallas_src>

<mosaic_0001>
module attributes {stable_mosaic.version = 11 : i64} {
  func.func @lstm_attn_kernel(%arg0: i32, %arg1: memref<8x8x32xf32, #tpu.memory_space<vmem>>, %arg2: memref<8x1xi32, #tpu.memory_space<vmem>>, %arg3: memref<32x128xf32, #tpu.memory_space<vmem>>, %arg4: memref<32x128xf32, #tpu.memory_space<vmem>>, %arg5: memref<1x128xf32, #tpu.memory_space<vmem>>, %arg6: memref<1x32xf32, #tpu.memory_space<vmem>>, %arg7: memref<1x1xf32, #tpu.memory_space<vmem>>, %arg8: memref<32x4xf32, #tpu.memory_space<vmem>>, %arg9: memref<1x4xf32, #tpu.memory_space<vmem>>, %arg10: memref<8x4xf32, #tpu.memory_space<vmem>>, %arg11: memref<8x8x128xf32, #tpu.memory_space<vmem>>) attributes {dimension_semantics = [#tpu.dimension_semantics<parallel>], iteration_bounds = array<i64: 1>, scalar_prefetch = 0 : i64, scratch_operands = 1 : i64, tpu.core_type = #tpu.core_type<tc>, window_params = [{transform_indices = @transform_0, window_bounds = array<i64: 8, 8, 32>}, {transform_indices = @transform_1, window_bounds = array<i64: 8, 1>}, {pipeline_mode = #tpu.pipeline_mode<synchronous>, transform_indices = @transform_2, window_bounds = array<i64: 32, 128>}, {pipeline_mode = #tpu.pipeline_mode<synchronous>, transform_indices = @transform_3, window_bounds = array<i64: 32, 128>}, {pipeline_mode = #tpu.pipeline_mode<synchronous>, transform_indices = @transform_4, window_bounds = array<i64: 1, 128>}, {pipeline_mode = #tpu.pipeline_mode<synchronous>, transform_indices = @transform_5, window_bounds = array<i64: 1, 32>}, {pipeline_mode = #tpu.pipeline_mode<synchronous>, transform_indices = @transform_6, window_bounds = array<i64: 1, 1>}, {pipeline_mode = #tpu.pipeline_mode<synchronous>, transform_indices = @transform_7, window_bounds = array<i64: 32, 4>}, {pipeline_mode = #tpu.pipeline_mode<synchronous>, transform_indices = @transform_8, window_bounds = array<i64: 1, 4>}, {transform_indices = @transform_9, window_bounds = array<i64: 8, 4>}]} {
    %c0 = arith.constant 0 : index
    %c0_0 = arith.constant 0 : index
    %0 = vector.load %arg3[%c0, %c0_0] : memref<32x128xf32, #tpu.memory_space<vmem>>, vector<32x128xf32>
    %c0_1 = arith.constant 0 : index
    %c0_2 = arith.constant 0 : index
    %1 = vector.load %arg5[%c0_1, %c0_2] : memref<1x128xf32, #tpu.memory_space<vmem>>, vector<1x128xf32>
    %c0_3 = arith.constant 0 : index
    %c0_4 = arith.constant 0 : index
    %c0_5 = arith.constant 0 : index
    %2 = vector.load %arg1[%c0_3, %c0_4, %c0_5] : memref<8x8x32xf32, #tpu.memory_space<vmem>>, vector<1x8x32xf32>
    %3 = vector.shape_cast %2 : vector<1x8x32xf32> to vector<8x32xf32>
    %cst = arith.constant dense<0.000000e+00> : vector<8x128xf32>
    %4 = tpu.matmul %3, %0, %cst {dimension_numbers = #tpu.dot_dimension_numbers<[1], [0], [0], [1], [0, 0, 1, 1], [], []>} : vector<8x32xf32>, vector<32x128xf32>, vector<8x128xf32> -> vector<8x128xf32>
    %5 = vector.broadcast %1 : vector<1x128xf32> to vector<8x128xf32>
    %6 = arith.addf %4, %5 : vector<8x128xf32>
    %c0_6 = arith.constant 0 : index
    %c0_7 = arith.constant 0 : index
    %c0_8 = arith.constant 0 : index
    %7 = vector.load %arg11[%c0_6, %c0_7, %c0_8] : memref<8x8x128xf32, #tpu.memory_space<vmem>>, vector<1x8x128xf32>
    %8 = vector.shape_cast %7 : vector<1x8x128xf32> to vector<8x128xf32>
    %9 = vector.shape_cast %6 : vector<8x128xf32> to vector<1x8x128xf32>
    tpu.vector_store %arg11[%c0_6, %c0_7, %c0_8], %9 {strides = array<i32>} : memref<8x8x128xf32, #tpu.memory_space<vmem>>, vector<1x8x128xf32>,
    %c1 = arith.constant 1 : index
    %c0_9 = arith.constant 0 : index
    %c0_10 = arith.constant 0 : index
    %10 = vector.load %arg1[%c1, %c0_9, %c0_10] : memref<8x8x32xf32, #tpu.memory_space<vmem>>, vector<1x8x32xf32>
    %11 = vector.shape_cast %10 : vector<1x8x32xf32> to vector<8x32xf32>
    %cst_11 = arith.constant dense<0.000000e+00> : vector<8x128xf32>
    %12 = tpu.matmul %11, %0, %cst_11 {dimension_numbers = #tpu.dot_dimension_numbers<[1], [0], [0], [1], [0, 0, 1, 1], [], []>} : vector<8x32xf32>, vector<32x128xf32>, vector<8x128xf32> -> vector<8x128xf32>
    %13 = vector.broadcast %1 : vector<1x128xf32> to vector<8x128xf32>
    %14 = arith.addf %12, %13 : vector<8x128xf32>
    %c1_12 = arith.constant 1 : index
    %c0_13 = arith.constant 0 : index
    %c0_14 = arith.constant 0 : index
    %15 = vector.load %arg11[%c1_12, %c0_13, %c0_14] : memref<8x8x128xf32, #tpu.memory_space<vmem>>, vector<1x8x128xf32>
    %16 = vector.shape_cast %15 : vector<1x8x128xf32> to vector<8x128xf32>
    %17 = vector.shape_cast %14 : vector<8x128xf32> to vector<1x8x128xf32>
    tpu.vector_store %arg11[%c1_12, %c0_13, %c0_14], %17 {strides = array<i32>} : memref<8x8x128xf32, #tpu.memory_space<vmem>>, vector<1x8x128xf32>,
    %c2 = arith.constant 2 : index
    %c0_15 = arith.constant 0 : index
    %c0_16 = arith.constant 0 : index
    %18 = vector.load %arg1[%c2, %c0_15, %c0_16] : memref<8x8x32xf32, #tpu.memory_space<vmem>>, vector<1x8x32xf32>
    %19 = vector.shape_cast %18 : vector<1x8x32xf32> to vector<8x32xf32>
    %cst_17 = arith.constant dense<0.000000e+00> : vector<8x128xf32>
    %20 = tpu.matmul %19, %0, %cst_17 {dimension_numbers = #tpu.dot_dimension_numbers<[1], [0], [0], [1], [0, 0, 1, 1], [], []>} : vector<8x32xf32>, vector<32x128xf32>, vector<8x128xf32> -> vector<8x128xf32>
    %21 = vector.broadcast %1 : vector<1x128xf32> to vector<8x128xf32>
    %22 = arith.addf %20, %21 : vector<8x128xf32>
    %c2_18 = arith.constant 2 : index
    %c0_19 = arith.constant 0 : index
    %c0_20 = arith.constant 0 : index
    %23 = vector.load %arg11[%c2_18, %c0_19, %c0_20] : memref<8x8x128xf32, #tpu.memory_space<vmem>>, vector<1x8x128xf32>
    %24 = vector.shape_cast %23 : vector<1x8x128xf32> to vector<8x128xf32>
    %25 = vector.shape_cast %22 : vector<8x128xf32> to vector<1x8x128xf32>
    tpu.vector_store %arg11[%c2_18, %c0_19, %c0_20], %25 {strides = array<i32>} : memref<8x8x128xf32, #tpu.memory_space<vmem>>, vector<1x8x128xf32>,
    %c3 = arith.constant 3 : index
    %c0_21 = arith.constant 0 : index
    %c0_22 = arith.constant 0 : index
    %26 = vector.load %arg1[%c3, %c0_21, %c0_22] : memref<8x8x32xf32, #tpu.memory_space<vmem>>, vector<1x8x32xf32>
    %27 = vector.shape_cast %26 : vector<1x8x32xf32> to vector<8x32xf32>
    %cst_23 = arith.constant dense<0.000000e+00> : vector<8x128xf32>
    %28 = tpu.matmul %27, %0, %cst_23 {dimension_numbers = #tpu.dot_dimension_numbers<[1], [0], [0], [1], [0, 0, 1, 1], [], []>} : vector<8x32xf32>, vector<32x128xf32>, vector<8x128xf32> -> vector<8x128xf32>
    %29 = vector.broadcast %1 : vector<1x128xf32> to vector<8x128xf32>
    %30 = arith.addf %28, %29 : vector<8x128xf32>
    %c3_24 = arith.constant 3 : index
    %c0_25 = arith.constant 0 : index
    %c0_26 = arith.constant 0 : index
    %31 = vector.load %arg11[%c3_24, %c0_25, %c0_26] : memref<8x8x128xf32, #tpu.memory_space<vmem>>, vector<1x8x128xf32>
    %32 = vector.shape_cast %31 : vector<1x8x128xf32> to vector<8x128xf32>
    %33 = vector.shape_cast %30 : vector<8x128xf32> to vector<1x8x128xf32>
    tpu.vector_store %arg11[%c3_24, %c0_25, %c0_26], %33 {strides = array<i32>} : memref<8x8x128xf32, #tpu.memory_space<vmem>>, vector<1x8x128xf32>,
    %c4 = arith.constant 4 : index
    %c0_27 = arith.constant 0 : index
    %c0_28 = arith.constant 0 : index
    %34 = vector.load %arg1[%c4, %c0_27, %c0_28] : memref<8x8x32xf32, #tpu.memory_space<vmem>>, vector<1x8x32xf32>
    %35 = vector.shape_cast %34 : vector<1x8x32xf32> to vector<8x32xf32>
    %cst_29 = arith.constant dense<0.000000e+00> : vector<8x128xf32>
    %36 = tpu.matmul %35, %0, %cst_29 {dimension_numbers = #tpu.dot_dimension_numbers<[1], [0], [0], [1], [0, 0, 1, 1], [], []>} : vector<8x32xf32>, vector<32x128xf32>, vector<8x128xf32> -> vector<8x128xf32>
    %37 = vector.broadcast %1 : vector<1x128xf32> to vector<8x128xf32>
    %38 = arith.addf %36, %37 : vector<8x128xf32>
    %c4_30 = arith.constant 4 : index
    %c0_31 = arith.constant 0 : index
    %c0_32 = arith.constant 0 : index
    %39 = vector.load %arg11[%c4_30, %c0_31, %c0_32] : memref<8x8x128xf32, #tpu.memory_space<vmem>>, vector<1x8x128xf32>
    %40 = vector.shape_cast %39 : vector<1x8x128xf32> to vector<8x128xf32>
    %41 = vector.shape_cast %38 : vector<8x128xf32> to vector<1x8x128xf32>
    tpu.vector_store %arg11[%c4_30, %c0_31, %c0_32], %41 {strides = array<i32>} : memref<8x8x128xf32, #tpu.memory_space<vmem>>, vector<1x8x128xf32>,
    %c5 = arith.constant 5 : index
    %c0_33 = arith.constant 0 : index
    %c0_34 = arith.constant 0 : index
    %42 = vector.load %arg1[%c5, %c0_33, %c0_34] : memref<8x8x32xf32, #tpu.memory_space<vmem>>, vector<1x8x32xf32>
    %43 = vector.shape_cast %42 : vector<1x8x32xf32> to vector<8x32xf32>
    %cst_35 = arith.constant dense<0.000000e+00> : vector<8x128xf32>
    %44 = tpu.matmul %43, %0, %cst_35 {dimension_numbers = #tpu.dot_dimension_numbers<[1], [0], [0], [1], [0, 0, 1, 1], [], []>} : vector<8x32xf32>, vector<32x128xf32>, vector<8x128xf32> -> vector<8x128xf32>
    %45 = vector.broadcast %1 : vector<1x128xf32> to vector<8x128xf32>
    %46 = arith.addf %44, %45 : vector<8x128xf32>
    %c5_36 = arith.constant 5 : index
    %c0_37 = arith.constant 0 : index
    %c0_38 = arith.constant 0 : index
    %47 = vector.load %arg11[%c5_36, %c0_37, %c0_38] : memref<8x8x128xf32, #tpu.memory_space<vmem>>, vector<1x8x128xf32>
    %48 = vector.shape_cast %47 : vector<1x8x128xf32> to vector<8x128xf32>
    %49 = vector.shape_cast %46 : vector<8x128xf32> to vector<1x8x128xf32>
    tpu.vector_store %arg11[%c5_36, %c0_37, %c0_38], %49 {strides = array<i32>} : memref<8x8x128xf32, #tpu.memory_space<vmem>>, vector<1x8x128xf32>,
    %c6 = arith.constant 6 : index
    %c0_39 = arith.constant 0 : index
    %c0_40 = arith.constant 0 : index
    %50 = vector.load %arg1[%c6, %c0_39, %c0_40] : memref<8x8x32xf32, #tpu.memory_space<vmem>>, vector<1x8x32xf32>
    %51 = vector.shape_cast %50 : vector<1x8x32xf32> to vector<8x32xf32>
    %cst_41 = arith.constant dense<0.000000e+00> : vector<8x128xf32>
    %52 = tpu.matmul %51, %0, %cst_41 {dimension_numbers = #tpu.dot_dimension_numbers<[1], [0], [0], [1], [0, 0, 1, 1], [], []>} : vector<8x32xf32>, vector<32x128xf32>, vector<8x128xf32> -> vector<8x128xf32>
    %53 = vector.broadcast %1 : vector<1x128xf32> to vector<8x128xf32>
    %54 = arith.addf %52, %53 : vector<8x128xf32>
    %c6_42 = arith.constant 6 : index
    %c0_43 = arith.constant 0 : index
    %c0_44 = arith.constant 0 : index
    %55 = vector.load %arg11[%c6_42, %c0_43, %c0_44] : memref<8x8x128xf32, #tpu.memory_space<vmem>>, vector<1x8x128xf32>
    %56 = vector.shape_cast %55 : vector<1x8x128xf32> to vector<8x128xf32>
    %57 = vector.shape_cast %54 : vector<8x128xf32> to vector<1x8x128xf32>
    tpu.vector_store %arg11[%c6_42, %c0_43, %c0_44], %57 {strides = array<i32>} : memref<8x8x128xf32, #tpu.memory_space<vmem>>, vector<1x8x128xf32>,
    %c7 = arith.constant 7 : index
    %c0_45 = arith.constant 0 : index
    %c0_46 = arith.constant 0 : index
    %58 = vector.load %arg1[%c7, %c0_45, %c0_46] : memref<8x8x32xf32, #tpu.memory_space<vmem>>, vector<1x8x32xf32>
    %59 = vector.shape_cast %58 : vector<1x8x32xf32> to vector<8x32xf32>
    %cst_47 = arith.constant dense<0.000000e+00> : vector<8x128xf32>
    %60 = tpu.matmul %59, %0, %cst_47 {dimension_numbers = #tpu.dot_dimension_numbers<[1], [0], [0], [1], [0, 0, 1, 1], [], []>} : vector<8x32xf32>, vector<32x128xf32>, vector<8x128xf32> -> vector<8x128xf32>
    %61 = vector.broadcast %1 : vector<1x128xf32> to vector<8x128xf32>
    %62 = arith.addf %60, %61 : vector<8x128xf32>
    %c7_48 = arith.constant 7 : index
    %c0_49 = arith.constant 0 : index
    %c0_50 = arith.constant 0 : index
    %63 = vector.load %arg11[%c7_48, %c0_49, %c0_50] : memref<8x8x128xf32, #tpu.memory_space<vmem>>, vector<1x8x128xf32>
    %64 = vector.shape_cast %63 : vector<1x8x128xf32> to vector<8x128xf32>
    %65 = vector.shape_cast %62 : vector<8x128xf32> to vector<1x8x128xf32>
    tpu.vector_store %arg11[%c7_48, %c0_49, %c0_50], %65 {strides = array<i32>} : memref<8x8x128xf32, #tpu.memory_space<vmem>>, vector<1x8x128xf32>,
    %c0_51 = arith.constant 0 : index
    %c0_52 = arith.constant 0 : index
    %66 = vector.load %arg4[%c0_51, %c0_52] : memref<32x128xf32, #tpu.memory_space<vmem>>, vector<32x128xf32>
    %c0_53 = arith.constant 0 : index
    %c0_54 = arith.constant 0 : index
    %67 = vector.load %arg6[%c0_53, %c0_54] : memref<1x32xf32, #tpu.memory_space<vmem>>, vector<1x32xf32>
    %c0_55 = arith.constant 0 : index
    %c0_56 = arith.constant 0 : index
    %68 = vector.load %arg7[%c0_55, %c0_56] : memref<1x1xf32, #tpu.memory_space<vmem>>, vector<1x1xf32>
    %c0_57 = arith.constant 0 : index
    %c0_58 = arith.constant 0 : index
    %69 = vector.load %arg2[%c0_57, %c0_58] : memref<8x1xi32, #tpu.memory_space<vmem>>, vector<8x1xi32>
    %cst_59 = arith.constant 0.000000e+00 : f32
    %70 = vector.broadcast %cst_59 : f32 to vector<8x32xf32>
    %cst_60 = arith.constant 0.000000e+00 : f32
    %71 = vector.broadcast %cst_60 : f32 to vector<8x32xf32>
    %cst_61 = arith.constant -1.000000e+30 : f32
    %72 = vector.broadcast %cst_61 : f32 to vector<8x1xf32>
    %cst_62 = arith.constant 0.000000e+00 : f32
    %73 = vector.broadcast %cst_62 : f32 to vector<8x1xf32>
    %cst_63 = arith.constant 0.000000e+00 : f32
    %74 = vector.broadcast %cst_63 : f32 to vector<8x32xf32>
    %c0_64 = arith.constant 0 : index
    %c0_65 = arith.constant 0 : index
    %c0_66 = arith.constant 0 : index
    %75 = vector.load %arg11[%c0_64, %c0_65, %c0_66] : memref<8x8x128xf32, #tpu.memory_space<vmem>>, vector<1x8x128xf32>
    %76 = vector.shape_cast %75 : vector<1x8x128xf32> to vector<8x128xf32>
    %cst_67 = arith.constant dense<0.000000e+00> : vector<8x128xf32>
    %77 = tpu.matmul %70, %66, %cst_67 {dimension_numbers = #tpu.dot_dimension_numbers<[1], [0], [0], [1], [0, 0, 1, 1], [], []>} : vector<8x32xf32>, vector<32x128xf32>, vector<8x128xf32> -> vector<8x128xf32>
    %78 = arith.addf %76, %77 : vector<8x128xf32>
    %79 = vector.extract_strided_slice %78 {offsets = [0, 0], sizes = [8, 96], strides = [1, 1]} : vector<8x128xf32> to vector<8x96xf32>
    %80 = arith.negf %79 : vector<8x96xf32>
    %81 = math.exp %80 : vector<8x96xf32>
    %cst_68 = arith.constant 1.000000e+00 : f32
    %82 = vector.broadcast %cst_68 : f32 to vector<8x96xf32>
    %83 = arith.addf %82, %81 : vector<8x96xf32>
    %84 = arith.divf %82, %83 : vector<8x96xf32>
    %85 = vector.extract_strided_slice %84 {offsets = [0, 0], sizes = [8, 32], strides = [1, 1]} : vector<8x96xf32> to vector<8x32xf32>
    %86 = vector.extract_strided_slice %84 {offsets = [0, 32], sizes = [8, 32], strides = [1, 1]} : vector<8x96xf32> to vector<8x32xf32>
    %87 = vector.extract_strided_slice %84 {offsets = [0, 64], sizes = [8, 32], strides = [1, 1]} : vector<8x96xf32> to vector<8x32xf32>
    %88 = vector.extract_strided_slice %78 {offsets = [0, 96], sizes = [8, 32], strides = [1, 1]} : vector<8x128xf32> to vector<8x32xf32>
    %89 = math.tanh %88 : vector<8x32xf32>
    %90 = arith.mulf %86, %71 : vector<8x32xf32>
    %91 = arith.mulf %85, %89 : vector<8x32xf32>
    %92 = arith.addf %90, %91 : vector<8x32xf32>
    %93 = math.tanh %92 : vector<8x32xf32>
    %94 = arith.mulf %87, %93 : vector<8x32xf32>
    %c0_i32 = arith.constant 0 : i32
    %95 = vector.broadcast %c0_i32 : i32 to vector<8x1xi32>
    %96 = arith.cmpi sgt, %69, %95 : vector<8x1xi32>
    %97 = vector.shape_cast %96 : vector<8x1xi1> to vector<8x1xi1>
    %98 = vector.broadcast %97 : vector<8x1xi1> to vector<8x32xi1>
    %99 = arith.select %98, %94, %70 : vector<8x32xi1>, vector<8x32xf32>
    %100 = vector.shape_cast %96 : vector<8x1xi1> to vector<8x1xi1>
    %101 = vector.broadcast %100 : vector<8x1xi1> to vector<8x32xi1>
    %102 = arith.select %101, %92, %71 : vector<8x32xi1>, vector<8x32xf32>
    %cst_69 = arith.constant 0.000000e+00 : f32
    %103 = vector.shape_cast %96 : vector<8x1xi1> to vector<8x1xi1>
    %104 = vector.broadcast %103 : vector<8x1xi1> to vector<8x32xi1>
    %105 = vector.broadcast %cst_69 : f32 to vector<8x32xf32>
    %106 = arith.select %104, %94, %105 : vector<8x32xi1>, vector<8x32xf32>
    %107 = vector.broadcast %67 : vector<1x32xf32> to vector<8x32xf32>
    %108 = arith.mulf %106, %107 : vector<8x32xf32>
    %cst_70 = arith.constant dense<0.000000e+00> : vector<8xf32>
    %109 = vector.multi_reduction <add>, %108, %cst_70 [1] : vector<8x32xf32> to vector<8xf32>
    %110 = vector.shape_cast %109 : vector<8xf32> to vector<8x1xf32>
    %111 = vector.broadcast %68 : vector<1x1xf32> to vector<8x1xf32>
    %112 = arith.addf %110, %111 : vector<8x1xf32>
    %113 = arith.maximumf %72, %112 : vector<8x1xf32>
    %114 = arith.subf %72, %113 : vector<8x1xf32>
    %115 = math.exp %114 : vector<8x1xf32>
    %116 = arith.subf %112, %113 : vector<8x1xf32>
    %117 = math.exp %116 : vector<8x1xf32>
    %118 = arith.mulf %115, %73 : vector<8x1xf32>
    %119 = arith.addf %118, %117 : vector<8x1xf32>
    %120 = vector.broadcast %115 : vector<8x1xf32> to vector<8x32xf32>
    %121 = arith.mulf %120, %74 : vector<8x32xf32>
    %122 = vector.broadcast %117 : vector<8x1xf32> to vector<8x32xf32>
    %123 = arith.mulf %122, %106 : vector<8x32xf32>
    %124 = arith.addf %121, %123 : vector<8x32xf32>
    %c1_71 = arith.constant 1 : index
    %c0_72 = arith.constant 0 : index
    %c0_73 = arith.constant 0 : index
    %125 = vector.load %arg11[%c1_71, %c0_72, %c0_73] : memref<8x8x128xf32, #tpu.memory_space<vmem>>, vector<1x8x128xf32>
    %126 = vector.shape_cast %125 : vector<1x8x128xf32> to vector<8x128xf32>
    %cst_74 = arith.constant dense<0.000000e+00> : vector<8x128xf32>
    %127 = tpu.matmul %99, %66, %cst_74 {dimension_numbers = #tpu.dot_dimension_numbers<[1], [0], [0], [1], [0, 0, 1, 1], [], []>} : vector<8x32xf32>, vector<32x128xf32>, vector<8x128xf32> -> vector<8x128xf32>
    %128 = arith.addf %126, %127 : vector<8x128xf32>
    %129 = vector.extract_strided_slice %128 {offsets = [0, 0], sizes = [8, 96], strides = [1, 1]} : vector<8x128xf32> to vector<8x96xf32>
    %130 = arith.negf %129 : vector<8x96xf32>
    %131 = math.exp %130 : vector<8x96xf32>
    %cst_75 = arith.constant 1.000000e+00 : f32
    %132 = vector.broadcast %cst_75 : f32 to vector<8x96xf32>
    %133 = arith.addf %132, %131 : vector<8x96xf32>
    %134 = arith.divf %132, %133 : vector<8x96xf32>
    %135 = vector.extract_strided_slice %134 {offsets = [0, 0], sizes = [8, 32], strides = [1, 1]} : vector<8x96xf32> to vector<8x32xf32>
    %136 = vector.extract_strided_slice %134 {offsets = [0, 32], sizes = [8, 32], strides = [1, 1]} : vector<8x96xf32> to vector<8x32xf32>
    %137 = vector.extract_strided_slice %134 {offsets = [0, 64], sizes = [8, 32], strides = [1, 1]} : vector<8x96xf32> to vector<8x32xf32>
    %138 = vector.extract_strided_slice %128 {offsets = [0, 96], sizes = [8, 32], strides = [1, 1]} : vector<8x128xf32> to vector<8x32xf32>
    %139 = math.tanh %138 : vector<8x32xf32>
    %140 = arith.mulf %136, %102 : vector<8x32xf32>
    %141 = arith.mulf %135, %139 : vector<8x32xf32>
    %142 = arith.addf %140, %141 : vector<8x32xf32>
    %143 = math.tanh %142 : vector<8x32xf32>
    %144 = arith.mulf %137, %143 : vector<8x32xf32>
    %c1_i32 = arith.constant 1 : i32
    %145 = vector.broadcast %c1_i32 : i32 to vector<8x1xi32>
    %146 = arith.cmpi sgt, %69, %145 : vector<8x1xi32>
    %147 = vector.shape_cast %146 : vector<8x1xi1> to vector<8x1xi1>
    %148 = vector.broadcast %147 : vector<8x1xi1> to vector<8x32xi1>
    %149 = arith.select %148, %144, %99 : vector<8x32xi1>, vector<8x32xf32>
    %150 = vector.shape_cast %146 : vector<8x1xi1> to vector<8x1xi1>
    %151 = vector.broadcast %150 : vector<8x1xi1> to vector<8x32xi1>
    %152 = arith.select %151, %142, %102 : vector<8x32xi1>, vector<8x32xf32>
    %cst_76 = arith.constant 0.000000e+00 : f32
    %153 = vector.shape_cast %146 : vector<8x1xi1> to vector<8x1xi1>
    %154 = vector.broadcast %153 : vector<8x1xi1> to vector<8x32xi1>
    %155 = vector.broadcast %cst_76 : f32 to vector<8x32xf32>
    %156 = arith.select %154, %144, %155 : vector<8x32xi1>, vector<8x32xf32>
    %157 = vector.broadcast %67 : vector<1x32xf32> to vector<8x32xf32>
    %158 = arith.mulf %156, %157 : vector<8x32xf32>
    %cst_77 = arith.constant dense<0.000000e+00> : vector<8xf32>
    %159 = vector.multi_reduction <add>, %158, %cst_77 [1] : vector<8x32xf32> to vector<8xf32>
    %160 = vector.shape_cast %159 : vector<8xf32> to vector<8x1xf32>
    %161 = vector.broadcast %68 : vector<1x1xf32> to vector<8x1xf32>
    %162 = arith.addf %160, %161 : vector<8x1xf32>
    %163 = arith.maximumf %113, %162 : vector<8x1xf32>
    %164 = arith.subf %113, %163 : vector<8x1xf32>
    %165 = math.exp %164 : vector<8x1xf32>
    %166 = arith.subf %162, %163 : vector<8x1xf32>
    %167 = math.exp %166 : vector<8x1xf32>
    %168 = arith.mulf %165, %119 : vector<8x1xf32>
    %169 = arith.addf %168, %167 : vector<8x1xf32>
    %170 = vector.broadcast %165 : vector<8x1xf32> to vector<8x32xf32>
    %171 = arith.mulf %170, %124 : vector<8x32xf32>
    %172 = vector.broadcast %167 : vector<8x1xf32> to vector<8x32xf32>
    %173 = arith.mulf %172, %156 : vector<8x32xf32>
    %174 = arith.addf %171, %173 : vector<8x32xf32>
    %c2_78 = arith.constant 2 : index
    %c0_79 = arith.constant 0 : index
    %c0_80 = arith.constant 0 : index
    %175 = vector.load %arg11[%c2_78, %c0_79, %c0_80] : memref<8x8x128xf32, #tpu.memory_space<vmem>>, vector<1x8x128xf32>
    %176 = vector.shape_cast %175 : vector<1x8x128xf32> to vector<8x128xf32>
    %cst_81 = arith.constant dense<0.000000e+00> : vector<8x128xf32>
    %177 = tpu.matmul %149, %66, %cst_81 {dimension_numbers = #tpu.dot_dimension_numbers<[1], [0], [0], [1], [0, 0, 1, 1], [], []>} : vector<8x32xf32>, vector<32x128xf32>, vector<8x128xf32> -> vector<8x128xf32>
    %178 = arith.addf %176, %177 : vector<8x128xf32>
    %179 = vector.extract_strided_slice %178 {offsets = [0, 0], sizes = [8, 96], strides = [1, 1]} : vector<8x128xf32> to vector<8x96xf32>
    %180 = arith.negf %179 : vector<8x96xf32>
    %181 = math.exp %180 : vector<8x96xf32>
    %cst_82 = arith.constant 1.000000e+00 : f32
    %182 = vector.broadcast %cst_82 : f32 to vector<8x96xf32>
    %183 = arith.addf %182, %181 : vector<8x96xf32>
    %184 = arith.divf %182, %183 : vector<8x96xf32>
    %185 = vector.extract_strided_slice %184 {offsets = [0, 0], sizes = [8, 32], strides = [1, 1]} : vector<8x96xf32> to vector<8x32xf32>
    %186 = vector.extract_strided_slice %184 {offsets = [0, 32], sizes = [8, 32], strides = [1, 1]} : vector<8x96xf32> to vector<8x32xf32>
    %187 = vector.extract_strided_slice %184 {offsets = [0, 64], sizes = [8, 32], strides = [1, 1]} : vector<8x96xf32> to vector<8x32xf32>
    %188 = vector.extract_strided_slice %178 {offsets = [0, 96], sizes = [8, 32], strides = [1, 1]} : vector<8x128xf32> to vector<8x32xf32>
    %189 = math.tanh %188 : vector<8x32xf32>
    %190 = arith.mulf %186, %152 : vector<8x32xf32>
    %191 = arith.mulf %185, %189 : vector<8x32xf32>
    %192 = arith.addf %190, %191 : vector<8x32xf32>
    %193 = math.tanh %192 : vector<8x32xf32>
    %194 = arith.mulf %187, %193 : vector<8x32xf32>
    %c2_i32 = arith.constant 2 : i32
    %195 = vector.broadcast %c2_i32 : i32 to vector<8x1xi32>
    %196 = arith.cmpi sgt, %69, %195 : vector<8x1xi32>
    %197 = vector.shape_cast %196 : vector<8x1xi1> to vector<8x1xi1>
    %198 = vector.broadcast %197 : vector<8x1xi1> to vector<8x32xi1>
    %199 = arith.select %198, %194, %149 : vector<8x32xi1>, vector<8x32xf32>
    %200 = vector.shape_cast %196 : vector<8x1xi1> to vector<8x1xi1>
    %201 = vector.broadcast %200 : vector<8x1xi1> to vector<8x32xi1>
    %202 = arith.select %201, %192, %152 : vector<8x32xi1>, vector<8x32xf32>
    %cst_83 = arith.constant 0.000000e+00 : f32
    %203 = vector.shape_cast %196 : vector<8x1xi1> to vector<8x1xi1>
    %204 = vector.broadcast %203 : vector<8x1xi1> to vector<8x32xi1>
    %205 = vector.broadcast %cst_83 : f32 to vector<8x32xf32>
    %206 = arith.select %204, %194, %205 : vector<8x32xi1>, vector<8x32xf32>
    %207 = vector.broadcast %67 : vector<1x32xf32> to vector<8x32xf32>
    %208 = arith.mulf %206, %207 : vector<8x32xf32>
    %cst_84 = arith.constant dense<0.000000e+00> : vector<8xf32>
    %209 = vector.multi_reduction <add>, %208, %cst_84 [1] : vector<8x32xf32> to vector<8xf32>
    %210 = vector.shape_cast %209 : vector<8xf32> to vector<8x1xf32>
    %211 = vector.broadcast %68 : vector<1x1xf32> to vector<8x1xf32>
    %212 = arith.addf %210, %211 : vector<8x1xf32>
    %213 = arith.maximumf %163, %212 : vector<8x1xf32>
    %214 = arith.subf %163, %213 : vector<8x1xf32>
    %215 = math.exp %214 : vector<8x1xf32>
    %216 = arith.subf %212, %213 : vector<8x1xf32>
    %217 = math.exp %216 : vector<8x1xf32>
    %218 = arith.mulf %215, %169 : vector<8x1xf32>
    %219 = arith.addf %218, %217 : vector<8x1xf32>
    %220 = vector.broadcast %215 : vector<8x1xf32> to vector<8x32xf32>
    %221 = arith.mulf %220, %174 : vector<8x32xf32>
    %222 = vector.broadcast %217 : vector<8x1xf32> to vector<8x32xf32>
    %223 = arith.mulf %222, %206 : vector<8x32xf32>
    %224 = arith.addf %221, %223 : vector<8x32xf32>
    %c3_85 = arith.constant 3 : index
    %c0_86 = arith.constant 0 : index
    %c0_87 = arith.constant 0 : index
    %225 = vector.load %arg11[%c3_85, %c0_86, %c0_87] : memref<8x8x128xf32, #tpu.memory_space<vmem>>, vector<1x8x128xf32>
    %226 = vector.shape_cast %225 : vector<1x8x128xf32> to vector<8x128xf32>
    %cst_88 = arith.constant dense<0.000000e+00> : vector<8x128xf32>
    %227 = tpu.matmul %199, %66, %cst_88 {dimension_numbers = #tpu.dot_dimension_numbers<[1], [0], [0], [1], [0, 0, 1, 1], [], []>} : vector<8x32xf32>, vector<32x128xf32>, vector<8x128xf32> -> vector<8x128xf32>
    %228 = arith.addf %226, %227 : vector<8x128xf32>
    %229 = vector.extract_strided_slice %228 {offsets = [0, 0], sizes = [8, 96], strides = [1, 1]} : vector<8x128xf32> to vector<8x96xf32>
    %230 = arith.negf %229 : vector<8x96xf32>
    %231 = math.exp %230 : vector<8x96xf32>
    %cst_89 = arith.constant 1.000000e+00 : f32
    %232 = vector.broadcast %cst_89 : f32 to vector<8x96xf32>
    %233 = arith.addf %232, %231 : vector<8x96xf32>
    %234 = arith.divf %232, %233 : vector<8x96xf32>
    %235 = vector.extract_strided_slice %234 {offsets = [0, 0], sizes = [8, 32], strides = [1, 1]} : vector<8x96xf32> to vector<8x32xf32>
    %236 = vector.extract_strided_slice %234 {offsets = [0, 32], sizes = [8, 32], strides = [1, 1]} : vector<8x96xf32> to vector<8x32xf32>
    %237 = vector.extract_strided_slice %234 {offsets = [0, 64], sizes = [8, 32], strides = [1, 1]} : vector<8x96xf32> to vector<8x32xf32>
    %238 = vector.extract_strided_slice %228 {offsets = [0, 96], sizes = [8, 32], strides = [1, 1]} : vector<8x128xf32> to vector<8x32xf32>
    %239 = math.tanh %238 : vector<8x32xf32>
    %240 = arith.mulf %236, %202 : vector<8x32xf32>
    %241 = arith.mulf %235, %239 : vector<8x32xf32>
    %242 = arith.addf %240, %241 : vector<8x32xf32>
    %243 = math.tanh %242 : vector<8x32xf32>
    %244 = arith.mulf %237, %243 : vector<8x32xf32>
    %c3_i32 = arith.constant 3 : i32
    %245 = vector.broadcast %c3_i32 : i32 to vector<8x1xi32>
    %246 = arith.cmpi sgt, %69, %245 : vector<8x1xi32>
    %247 = vector.shape_cast %246 : vector<8x1xi1> to vector<8x1xi1>
    %248 = vector.broadcast %247 : vector<8x1xi1> to vector<8x32xi1>
    %249 = arith.select %248, %244, %199 : vector<8x32xi1>, vector<8x32xf32>
    %250 = vector.shape_cast %246 : vector<8x1xi1> to vector<8x1xi1>
    %251 = vector.broadcast %250 : vector<8x1xi1> to vector<8x32xi1>
    %252 = arith.select %251, %242, %202 : vector<8x32xi1>, vector<8x32xf32>
    %cst_90 = arith.constant 0.000000e+00 : f32
    %253 = vector.shape_cast %246 : vector<8x1xi1> to vector<8x1xi1>
    %254 = vector.broadcast %253 : vector<8x1xi1> to vector<8x32xi1>
    %255 = vector.broadcast %cst_90 : f32 to vector<8x32xf32>
    %256 = arith.select %254, %244, %255 : vector<8x32xi1>, vector<8x32xf32>
    %257 = vector.broadcast %67 : vector<1x32xf32> to vector<8x32xf32>
    %258 = arith.mulf %256, %257 : vector<8x32xf32>
    %cst_91 = arith.constant dense<0.000000e+00> : vector<8xf32>
    %259 = vector.multi_reduction <add>, %258, %cst_91 [1] : vector<8x32xf32> to vector<8xf32>
    %260 = vector.shape_cast %259 : vector<8xf32> to vector<8x1xf32>
    %261 = vector.broadcast %68 : vector<1x1xf32> to vector<8x1xf32>
    %262 = arith.addf %260, %261 : vector<8x1xf32>
    %263 = arith.maximumf %213, %262 : vector<8x1xf32>
    %264 = arith.subf %213, %263 : vector<8x1xf32>
    %265 = math.exp %264 : vector<8x1xf32>
    %266 = arith.subf %262, %263 : vector<8x1xf32>
    %267 = math.exp %266 : vector<8x1xf32>
    %268 = arith.mulf %265, %219 : vector<8x1xf32>
    %269 = arith.addf %268, %267 : vector<8x1xf32>
    %270 = vector.broadcast %265 : vector<8x1xf32> to vector<8x32xf32>
    %271 = arith.mulf %270, %224 : vector<8x32xf32>
    %272 = vector.broadcast %267 : vector<8x1xf32> to vector<8x32xf32>
    %273 = arith.mulf %272, %256 : vector<8x32xf32>
    %274 = arith.addf %271, %273 : vector<8x32xf32>
    %c4_92 = arith.constant 4 : index
    %c0_93 = arith.constant 0 : index
    %c0_94 = arith.constant 0 : index
    %275 = vector.load %arg11[%c4_92, %c0_93, %c0_94] : memref<8x8x128xf32, #tpu.memory_space<vmem>>, vector<1x8x128xf32>
    %276 = vector.shape_cast %275 : vector<1x8x128xf32> to vector<8x128xf32>
    %cst_95 = arith.constant dense<0.000000e+00> : vector<8x128xf32>
    %277 = tpu.matmul %249, %66, %cst_95 {dimension_numbers = #tpu.dot_dimension_numbers<[1], [0], [0], [1], [0, 0, 1, 1], [], []>} : vector<8x32xf32>, vector<32x128xf32>, vector<8x128xf32> -> vector<8x128xf32>
    %278 = arith.addf %276, %277 : vector<8x128xf32>
    %279 = vector.extract_strided_slice %278 {offsets = [0, 0], sizes = [8, 96], strides = [1, 1]} : vector<8x128xf32> to vector<8x96xf32>
    %280 = arith.negf %279 : vector<8x96xf32>
    %281 = math.exp %280 : vector<8x96xf32>
    %cst_96 = arith.constant 1.000000e+00 : f32
    %282 = vector.broadcast %cst_96 : f32 to vector<8x96xf32>
    %283 = arith.addf %282, %281 : vector<8x96xf32>
    %284 = arith.divf %282, %283 : vector<8x96xf32>
    %285 = vector.extract_strided_slice %284 {offsets = [0, 0], sizes = [8, 32], strides = [1, 1]} : vector<8x96xf32> to vector<8x32xf32>
    %286 = vector.extract_strided_slice %284 {offsets = [0, 32], sizes = [8, 32], strides = [1, 1]} : vector<8x96xf32> to vector<8x32xf32>
    %287 = vector.extract_strided_slice %284 {offsets = [0, 64], sizes = [8, 32], strides = [1, 1]} : vector<8x96xf32> to vector<8x32xf32>
    %288 = vector.extract_strided_slice %278 {offsets = [0, 96], sizes = [8, 32], strides = [1, 1]} : vector<8x128xf32> to vector<8x32xf32>
    %289 = math.tanh %288 : vector<8x32xf32>
    %290 = arith.mulf %286, %252 : vector<8x32xf32>
    %291 = arith.mulf %285, %289 : vector<8x32xf32>
    %292 = arith.addf %290, %291 : vector<8x32xf32>
    %293 = math.tanh %292 : vector<8x32xf32>
    %294 = arith.mulf %287, %293 : vector<8x32xf32>
    %c4_i32 = arith.constant 4 : i32
    %295 = vector.broadcast %c4_i32 : i32 to vector<8x1xi32>
    %296 = arith.cmpi sgt, %69, %295 : vector<8x1xi32>
    %297 = vector.shape_cast %296 : vector<8x1xi1> to vector<8x1xi1>
    %298 = vector.broadcast %297 : vector<8x1xi1> to vector<8x32xi1>
    %299 = arith.select %298, %294, %249 : vector<8x32xi1>, vector<8x32xf32>
    %300 = vector.shape_cast %296 : vector<8x1xi1> to vector<8x1xi1>
    %301 = vector.broadcast %300 : vector<8x1xi1> to vector<8x32xi1>
    %302 = arith.select %301, %292, %252 : vector<8x32xi1>, vector<8x32xf32>
    %cst_97 = arith.constant 0.000000e+00 : f32
    %303 = vector.shape_cast %296 : vector<8x1xi1> to vector<8x1xi1>
    %304 = vector.broadcast %303 : vector<8x1xi1> to vector<8x32xi1>
    %305 = vector.broadcast %cst_97 : f32 to vector<8x32xf32>
    %306 = arith.select %304, %294, %305 : vector<8x32xi1>, vector<8x32xf32>
    %307 = vector.broadcast %67 : vector<1x32xf32> to vector<8x32xf32>
    %308 = arith.mulf %306, %307 : vector<8x32xf32>
    %cst_98 = arith.constant dense<0.000000e+00> : vector<8xf32>
    %309 = vector.multi_reduction <add>, %308, %cst_98 [1] : vector<8x32xf32> to vector<8xf32>
    %310 = vector.shape_cast %309 : vector<8xf32> to vector<8x1xf32>
    %311 = vector.broadcast %68 : vector<1x1xf32> to vector<8x1xf32>
    %312 = arith.addf %310, %311 : vector<8x1xf32>
    %313 = arith.maximumf %263, %312 : vector<8x1xf32>
    %314 = arith.subf %263, %313 : vector<8x1xf32>
    %315 = math.exp %314 : vector<8x1xf32>
    %316 = arith.subf %312, %313 : vector<8x1xf32>
    %317 = math.exp %316 : vector<8x1xf32>
    %318 = arith.mulf %315, %269 : vector<8x1xf32>
    %319 = arith.addf %318, %317 : vector<8x1xf32>
    %320 = vector.broadcast %315 : vector<8x1xf32> to vector<8x32xf32>
    %321 = arith.mulf %320, %274 : vector<8x32xf32>
    %322 = vector.broadcast %317 : vector<8x1xf32> to vector<8x32xf32>
    %323 = arith.mulf %322, %306 : vector<8x32xf32>
    %324 = arith.addf %321, %323 : vector<8x32xf32>
    %c5_99 = arith.constant 5 : index
    %c0_100 = arith.constant 0 : index
    %c0_101 = arith.constant 0 : index
    %325 = vector.load %arg11[%c5_99, %c0_100, %c0_101] : memref<8x8x128xf32, #tpu.memory_space<vmem>>, vector<1x8x128xf32>
    %326 = vector.shape_cast %325 : vector<1x8x128xf32> to vector<8x128xf32>
    %cst_102 = arith.constant dense<0.000000e+00> : vector<8x128xf32>
    %327 = tpu.matmul %299, %66, %cst_102 {dimension_numbers = #tpu.dot_dimension_numbers<[1], [0], [0], [1], [0, 0, 1, 1], [], []>} : vector<8x32xf32>, vector<32x128xf32>, vector<8x128xf32> -> vector<8x128xf32>
    %328 = arith.addf %326, %327 : vector<8x128xf32>
    %329 = vector.extract_strided_slice %328 {offsets = [0, 0], sizes = [8, 96], strides = [1, 1]} : vector<8x128xf32> to vector<8x96xf32>
    %330 = arith.negf %329 : vector<8x96xf32>
    %331 = math.exp %330 : vector<8x96xf32>
    %cst_103 = arith.constant 1.000000e+00 : f32
    %332 = vector.broadcast %cst_103 : f32 to vector<8x96xf32>
    %333 = arith.addf %332, %331 : vector<8x96xf32>
    %334 = arith.divf %332, %333 : vector<8x96xf32>
    %335 = vector.extract_strided_slice %334 {offsets = [0, 0], sizes = [8, 32], strides = [1, 1]} : vector<8x96xf32> to vector<8x32xf32>
    %336 = vector.extract_strided_slice %334 {offsets = [0, 32], sizes = [8, 32], strides = [1, 1]} : vector<8x96xf32> to vector<8x32xf32>
    %337 = vector.extract_strided_slice %334 {offsets = [0, 64], sizes = [8, 32], strides = [1, 1]} : vector<8x96xf32> to vector<8x32xf32>
    %338 = vector.extract_strided_slice %328 {offsets = [0, 96], sizes = [8, 32], strides = [1, 1]} : vector<8x128xf32> to vector<8x32xf32>
    %339 = math.tanh %338 : vector<8x32xf32>
    %340 = arith.mulf %336, %302 : vector<8x32xf32>
    %341 = arith.mulf %335, %339 : vector<8x32xf32>
    %342 = arith.addf %340, %341 : vector<8x32xf32>
    %343 = math.tanh %342 : vector<8x32xf32>
    %344 = arith.mulf %337, %343 : vector<8x32xf32>
    %c5_i32 = arith.constant 5 : i32
    %345 = vector.broadcast %c5_i32 : i32 to vector<8x1xi32>
    %346 = arith.cmpi sgt, %69, %345 : vector<8x1xi32>
    %347 = vector.shape_cast %346 : vector<8x1xi1> to vector<8x1xi1>
    %348 = vector.broadcast %347 : vector<8x1xi1> to vector<8x32xi1>
    %349 = arith.select %348, %344, %299 : vector<8x32xi1>, vector<8x32xf32>
    %350 = vector.shape_cast %346 : vector<8x1xi1> to vector<8x1xi1>
    %351 = vector.broadcast %350 : vector<8x1xi1> to vector<8x32xi1>
    %352 = arith.select %351, %342, %302 : vector<8x32xi1>, vector<8x32xf32>
    %cst_104 = arith.constant 0.000000e+00 : f32
    %353 = vector.shape_cast %346 : vector<8x1xi1> to vector<8x1xi1>
    %354 = vector.broadcast %353 : vector<8x1xi1> to vector<8x32xi1>
    %355 = vector.broadcast %cst_104 : f32 to vector<8x32xf32>
    %356 = arith.select %354, %344, %355 : vector<8x32xi1>, vector<8x32xf32>
    %357 = vector.broadcast %67 : vector<1x32xf32> to vector<8x32xf32>
    %358 = arith.mulf %356, %357 : vector<8x32xf32>
    %cst_105 = arith.constant dense<0.000000e+00> : vector<8xf32>
    %359 = vector.multi_reduction <add>, %358, %cst_105 [1] : vector<8x32xf32> to vector<8xf32>
    %360 = vector.shape_cast %359 : vector<8xf32> to vector<8x1xf32>
    %361 = vector.broadcast %68 : vector<1x1xf32> to vector<8x1xf32>
    %362 = arith.addf %360, %361 : vector<8x1xf32>
    %363 = arith.maximumf %313, %362 : vector<8x1xf32>
    %364 = arith.subf %313, %363 : vector<8x1xf32>
    %365 = math.exp %364 : vector<8x1xf32>
    %366 = arith.subf %362, %363 : vector<8x1xf32>
    %367 = math.exp %366 : vector<8x1xf32>
    %368 = arith.mulf %365, %319 : vector<8x1xf32>
    %369 = arith.addf %368, %367 : vector<8x1xf32>
    %370 = vector.broadcast %365 : vector<8x1xf32> to vector<8x32xf32>
    %371 = arith.mulf %370, %324 : vector<8x32xf32>
    %372 = vector.broadcast %367 : vector<8x1xf32> to vector<8x32xf32>
    %373 = arith.mulf %372, %356 : vector<8x32xf32>
    %374 = arith.addf %371, %373 : vector<8x32xf32>
    %c6_106 = arith.constant 6 : index
    %c0_107 = arith.constant 0 : index
    %c0_108 = arith.constant 0 : index
    %375 = vector.load %arg11[%c6_106, %c0_107, %c0_108] : memref<8x8x128xf32, #tpu.memory_space<vmem>>, vector<1x8x128xf32>
    %376 = vector.shape_cast %375 : vector<1x8x128xf32> to vector<8x128xf32>
    %cst_109 = arith.constant dense<0.000000e+00> : vector<8x128xf32>
    %377 = tpu.matmul %349, %66, %cst_109 {dimension_numbers = #tpu.dot_dimension_numbers<[1], [0], [0], [1], [0, 0, 1, 1], [], []>} : vector<8x32xf32>, vector<32x128xf32>, vector<8x128xf32> -> vector<8x128xf32>
    %378 = arith.addf %376, %377 : vector<8x128xf32>
    %379 = vector.extract_strided_slice %378 {offsets = [0, 0], sizes = [8, 96], strides = [1, 1]} : vector<8x128xf32> to vector<8x96xf32>
    %380 = arith.negf %379 : vector<8x96xf32>
    %381 = math.exp %380 : vector<8x96xf32>
    %cst_110 = arith.constant 1.000000e+00 : f32
    %382 = vector.broadcast %cst_110 : f32 to vector<8x96xf32>
    %383 = arith.addf %382, %381 : vector<8x96xf32>
    %384 = arith.divf %382, %383 : vector<8x96xf32>
    %385 = vector.extract_strided_slice %384 {offsets = [0, 0], sizes = [8, 32], strides = [1, 1]} : vector<8x96xf32> to vector<8x32xf32>
    %386 = vector.extract_strided_slice %384 {offsets = [0, 32], sizes = [8, 32], strides = [1, 1]} : vector<8x96xf32> to vector<8x32xf32>
    %387 = vector.extract_strided_slice %384 {offsets = [0, 64], sizes = [8, 32], strides = [1, 1]} : vector<8x96xf32> to vector<8x32xf32>
    %388 = vector.extract_strided_slice %378 {offsets = [0, 96], sizes = [8, 32], strides = [1, 1]} : vector<8x128xf32> to vector<8x32xf32>
    %389 = math.tanh %388 : vector<8x32xf32>
    %390 = arith.mulf %386, %352 : vector<8x32xf32>
    %391 = arith.mulf %385, %389 : vector<8x32xf32>
    %392 = arith.addf %390, %391 : vector<8x32xf32>
    %393 = math.tanh %392 : vector<8x32xf32>
    %394 = arith.mulf %387, %393 : vector<8x32xf32>
    %c6_i32 = arith.constant 6 : i32
    %395 = vector.broadcast %c6_i32 : i32 to vector<8x1xi32>
    %396 = arith.cmpi sgt, %69, %395 : vector<8x1xi32>
    %397 = vector.shape_cast %396 : vector<8x1xi1> to vector<8x1xi1>
    %398 = vector.broadcast %397 : vector<8x1xi1> to vector<8x32xi1>
    %399 = arith.select %398, %394, %349 : vector<8x32xi1>, vector<8x32xf32>
    %400 = vector.shape_cast %396 : vector<8x1xi1> to vector<8x1xi1>
    %401 = vector.broadcast %400 : vector<8x1xi1> to vector<8x32xi1>
    %402 = arith.select %401, %392, %352 : vector<8x32xi1>, vector<8x32xf32>
    %cst_111 = arith.constant 0.000000e+00 : f32
    %403 = vector.shape_cast %396 : vector<8x1xi1> to vector<8x1xi1>
    %404 = vector.broadcast %403 : vector<8x1xi1> to vector<8x32xi1>
    %405 = vector.broadcast %cst_111 : f32 to vector<8x32xf32>
    %406 = arith.select %404, %394, %405 : vector<8x32xi1>, vector<8x32xf32>
    %407 = vector.broadcast %67 : vector<1x32xf32> to vector<8x32xf32>
    %408 = arith.mulf %406, %407 : vector<8x32xf32>
    %cst_112 = arith.constant dense<0.000000e+00> : vector<8xf32>
    %409 = vector.multi_reduction <add>, %408, %cst_112 [1] : vector<8x32xf32> to vector<8xf32>
    %410 = vector.shape_cast %409 : vector<8xf32> to vector<8x1xf32>
    %411 = vector.broadcast %68 : vector<1x1xf32> to vector<8x1xf32>
    %412 = arith.addf %410, %411 : vector<8x1xf32>
    %413 = arith.maximumf %363, %412 : vector<8x1xf32>
    %414 = arith.subf %363, %413 : vector<8x1xf32>
    %415 = math.exp %414 : vector<8x1xf32>
    %416 = arith.subf %412, %413 : vector<8x1xf32>
    %417 = math.exp %416 : vector<8x1xf32>
    %418 = arith.mulf %415, %369 : vector<8x1xf32>
    %419 = arith.addf %418, %417 : vector<8x1xf32>
    %420 = vector.broadcast %415 : vector<8x1xf32> to vector<8x32xf32>
    %421 = arith.mulf %420, %374 : vector<8x32xf32>
    %422 = vector.broadcast %417 : vector<8x1xf32> to vector<8x32xf32>
    %423 = arith.mulf %422, %406 : vector<8x32xf32>
    %424 = arith.addf %421, %423 : vector<8x32xf32>
    %c7_113 = arith.constant 7 : index
    %c0_114 = arith.constant 0 : index
    %c0_115 = arith.constant 0 : index
    %425 = vector.load %arg11[%c7_113, %c0_114, %c0_115] : memref<8x8x128xf32, #tpu.memory_space<vmem>>, vector<1x8x128xf32>
    %426 = vector.shape_cast %425 : vector<1x8x128xf32> to vector<8x128xf32>
    %cst_116 = arith.constant dense<0.000000e+00> : vector<8x128xf32>
    %427 = tpu.matmul %399, %66, %cst_116 {dimension_numbers = #tpu.dot_dimension_numbers<[1], [0], [0], [1], [0, 0, 1, 1], [], []>} : vector<8x32xf32>, vector<32x128xf32>, vector<8x128xf32> -> vector<8x128xf32>
    %428 = arith.addf %426, %427 : vector<8x128xf32>
    %429 = vector.extract_strided_slice %428 {offsets = [0, 0], sizes = [8, 96], strides = [1, 1]} : vector<8x128xf32> to vector<8x96xf32>
    %430 = arith.negf %429 : vector<8x96xf32>
    %431 = math.exp %430 : vector<8x96xf32>
    %cst_117 = arith.constant 1.000000e+00 : f32
    %432 = vector.broadcast %cst_117 : f32 to vector<8x96xf32>
    %433 = arith.addf %432, %431 : vector<8x96xf32>
    %434 = arith.divf %432, %433 : vector<8x96xf32>
    %435 = vector.extract_strided_slice %434 {offsets = [0, 0], sizes = [8, 32], strides = [1, 1]} : vector<8x96xf32> to vector<8x32xf32>
    %436 = vector.extract_strided_slice %434 {offsets = [0, 32], sizes = [8, 32], strides = [1, 1]} : vector<8x96xf32> to vector<8x32xf32>
    %437 = vector.extract_strided_slice %434 {offsets = [0, 64], sizes = [8, 32], strides = [1, 1]} : vector<8x96xf32> to vector<8x32xf32>
    %438 = vector.extract_strided_slice %428 {offsets = [0, 96], sizes = [8, 32], strides = [1, 1]} : vector<8x128xf32> to vector<8x32xf32>
    %439 = math.tanh %438 : vector<8x32xf32>
    %440 = arith.mulf %436, %402 : vector<8x32xf32>
    %441 = arith.mulf %435, %439 : vector<8x32xf32>
    %442 = arith.addf %440, %441 : vector<8x32xf32>
    %443 = math.tanh %442 : vector<8x32xf32>
    %444 = arith.mulf %437, %443 : vector<8x32xf32>
    %c7_i32 = arith.constant 7 : i32
    %445 = vector.broadcast %c7_i32 : i32 to vector<8x1xi32>
    %446 = arith.cmpi sgt, %69, %445 : vector<8x1xi32>
    %cst_118 = arith.constant 0.000000e+00 : f32
    %447 = vector.shape_cast %446 : vector<8x1xi1> to vector<8x1xi1>
    %448 = vector.broadcast %447 : vector<8x1xi1> to vector<8x32xi1>
    %449 = vector.broadcast %cst_118 : f32 to vector<8x32xf32>
    %450 = arith.select %448, %444, %449 : vector<8x32xi1>, vector<8x32xf32>
    %451 = vector.broadcast %67 : vector<1x32xf32> to vector<8x32xf32>
    %452 = arith.mulf %450, %451 : vector<8x32xf32>
    %cst_119 = arith.constant dense<0.000000e+00> : vector<8xf32>
    %453 = vector.multi_reduction <add>, %452, %cst_119 [1] : vector<8x32xf32> to vector<8xf32>
    %454 = vector.shape_cast %453 : vector<8xf32> to vector<8x1xf32>
    %455 = vector.broadcast %68 : vector<1x1xf32> to vector<8x1xf32>
    %456 = arith.addf %454, %455 : vector<8x1xf32>
    %457 = arith.maximumf %413, %456 : vector<8x1xf32>
    %458 = arith.subf %413, %457 : vector<8x1xf32>
    %459 = math.exp %458 : vector<8x1xf32>
    %460 = arith.subf %456, %457 : vector<8x1xf32>
    %461 = math.exp %460 : vector<8x1xf32>
    %462 = arith.mulf %459, %419 : vector<8x1xf32>
    %463 = arith.addf %462, %461 : vector<8x1xf32>
    %464 = vector.broadcast %459 : vector<8x1xf32> to vector<8x32xf32>
    %465 = arith.mulf %464, %424 : vector<8x32xf32>
    %466 = vector.broadcast %461 : vector<8x1xf32> to vector<8x32xf32>
    %467 = arith.mulf %466, %450 : vector<8x32xf32>
    %468 = arith.addf %465, %467 : vector<8x32xf32>
    %469 = vector.broadcast %463 : vector<8x1xf32> to vector<8x32xf32>
    %470 = arith.divf %468, %469 : vector<8x32xf32>
    %c0_120 = arith.constant 0 : index
    %c0_121 = arith.constant 0 : index
    %471 = vector.load %arg8[%c0_120, %c0_121] : memref<32x4xf32, #tpu.memory_space<vmem>>, vector<32x4xf32>
    %cst_122 = arith.constant dense<0.000000e+00> : vector<8x4xf32>
    %472 = tpu.matmul %470, %471, %cst_122 {dimension_numbers = #tpu.dot_dimension_numbers<[1], [0], [0], [1], [0, 0, 1, 1], [], []>} : vector<8x32xf32>, vector<32x4xf32>, vector<8x4xf32> -> vector<8x4xf32>
    %c0_123 = arith.constant 0 : index
    %c0_124 = arith.constant 0 : index
    %473 = vector.load %arg9[%c0_123, %c0_124] : memref<1x4xf32, #tpu.memory_space<vmem>>, vector<1x4xf32>
    %474 = vector.broadcast %473 : vector<1x4xf32> to vector<8x4xf32>
    %475 = arith.addf %472, %474 : vector<8x4xf32>
    %cst_125 = arith.constant dense<0xFF800000> : vector<8xf32>
    %476 = vector.multi_reduction <maximumf>, %475, %cst_125 [1] : vector<8x4xf32> to vector<8xf32>
    %477 = vector.shape_cast %476 : vector<8xf32> to vector<8x1xf32>
    %478 = vector.broadcast %477 : vector<8x1xf32> to vector<8x4xf32>
    %479 = arith.subf %475, %478 : vector<8x4xf32>
    %480 = math.exp %479 : vector<8x4xf32>
    %cst_126 = arith.constant dense<0.000000e+00> : vector<8xf32>
    %481 = vector.multi_reduction <add>, %480, %cst_126 [1] : vector<8x4xf32> to vector<8xf32>
    %482 = vector.shape_cast %481 : vector<8xf32> to vector<8x1xf32>
    %483 = math.log %482 : vector<8x1xf32>
    %484 = arith.addf %477, %483 : vector<8x1xf32>
    %485 = vector.broadcast %484 : vector<8x1xf32> to vector<8x4xf32>
    %486 = arith.subf %475, %485 : vector<8x4xf32>
    %c0_127 = arith.constant 0 : index
    %c0_128 = arith.constant 0 : index
    %487 = vector.load %arg10[%c0_127, %c0_128] : memref<8x4xf32, #tpu.memory_space<vmem>>, vector<8x4xf32>
    tpu.vector_store %arg10[%c0_127, %c0_128], %486 {strides = array<i32>} : memref<8x4xf32, #tpu.memory_space<vmem>>, vector<8x4xf32>,
    return
  }
  func.func @transform_0(%arg0: i32) -> (i32, i32, i32) {
    %c0_i32 = arith.constant 0 : i32
    %c0_i32_0 = arith.constant 0 : i32
    %c0_i32_1 = arith.constant 0 : i32
    return %c0_i32, %arg0, %c0_i32_0 : i32, i32, i32
  }
  func.func @transform_1(%arg0: i32) -> (i32, i32) {
    %c0_i32 = arith.constant 0 : i32
    %c0_i32_0 = arith.constant 0 : i32
    return %arg0, %c0_i32 : i32, i32
  }
  func.func @transform_2(%arg0: i32) -> (i32, i32) {
    %c0_i32 = arith.constant 0 : i32
    %c0_i32_0 = arith.constant 0 : i32
    %c0_i32_1 = arith.constant 0 : i32
    return %c0_i32, %c0_i32_0 : i32, i32
  }
  func.func @transform_3(%arg0: i32) -> (i32, i32) {
    %c0_i32 = arith.constant 0 : i32
    %c0_i32_0 = arith.constant 0 : i32
    %c0_i32_1 = arith.constant 0 : i32
    return %c0_i32, %c0_i32_0 : i32, i32
  }
  func.func @transform_4(%arg0: i32) -> (i32, i32) {
    %c0_i32 = arith.constant 0 : i32
    %c0_i32_0 = arith.constant 0 : i32
    %c0_i32_1 = arith.constant 0 : i32
    return %c0_i32, %c0_i32_0 : i32, i32
  }
  func.func @transform_5(%arg0: i32) -> (i32, i32) {
    %c0_i32 = arith.constant 0 : i32
    %c0_i32_0 = arith.constant 0 : i32
    %c0_i32_1 = arith.constant 0 : i32
    return %c0_i32, %c0_i32_0 : i32, i32
  }
  func.func @transform_6(%arg0: i32) -> (i32, i32) {
    %c0_i32 = arith.constant 0 : i32
    %c0_i32_0 = arith.constant 0 : i32
    %c0_i32_1 = arith.constant 0 : i32
    return %c0_i32, %c0_i32_0 : i32, i32
  }
  func.func @transform_7(%arg0: i32) -> (i32, i32) {
    %c0_i32 = arith.constant 0 : i32
    %c0_i32_0 = arith.constant 0 : i32
    %c0_i32_1 = arith.constant 0 : i32
    return %c0_i32, %c0_i32_0 : i32, i32
  }
  func.func @transform_8(%arg0: i32) -> (i32, i32) {
    %c0_i32 = arith.constant 0 : i32
    %c0_i32_0 = arith.constant 0 : i32
    %c0_i32_1 = arith.constant 0 : i32
    return %c0_i32, %c0_i32_0 : i32, i32
  }
  func.func @transform_9(%arg0: i32) -> (i32, i32) {
    %c0_i32 = arith.constant 0 : i32
    %c0_i32_0 = arith.constant 0 : i32
    return %arg0, %c0_i32 : i32, i32
  }
}

</mosaic_0001>

<llo_original>
// kernel: tpu_custom_call.1
$region0: #{tpu_custom_call.1}
  #allocation0 [shape = 'u32[]', space=smem, size = 0x4, offset = 0x4, fixed_abs, tag = 'smem constant byte address 0x4 - core index']
  #allocation1 [shape = 'u32[144,128]{1,0:T(1,128)}', space=vmem, size = 0x12000, scoped, tag = 'internal scratch']
  #allocation2 [shape = 'f32[8,8,128]{2,1,0:T(8,128)}', space=vmem, size = 0x8000, scoped, tag = 'scratch operand']
  #allocation3 [shape = 'f32[1,1]{1,0:T(1,128)S(1)}', space=vmem, size = 0x200, scoped, tag = 'scoped memory for tpu_custom_call.1']
  %s0 = inlined_call_operand.hbm [shape: f32[8,8,32], index: 0, kind: input, shape index: {}]
  %s1 = inlined_call_operand.vmem [shape: s32[8,1], index: 1, kind: input, shape index: {}]
  %s2 = inlined_call_operand.vmem [shape: f32[32,128], index: 2, kind: input, shape index: {}]
  %s3 = inlined_call_operand.hbm [shape: f32[32,128], index: 3, kind: input, shape index: {}]
  %s4 = inlined_call_operand.vmem [shape: f32[1,128], index: 4, kind: input, shape index: {}]
  %s5 = inlined_call_operand.vmem [shape: f32[1,32], index: 5, kind: input, shape index: {}]
  %s6 = inlined_call_operand.<no memory space> [shape: f32[1,1], index: 6, kind: input, shape index: {}]
  %s7 = inlined_call_operand.vmem [shape: f32[32,4], index: 7, kind: input, shape index: {}]
  %s8 = inlined_call_operand.vmem [shape: f32[1,4], index: 8, kind: input, shape index: {}]
  %s9 = inlined_call_operand.vmem [shape: f32[8,4], index: 9, kind: output, shape index: {}]
  %s10 = sld [smem:[#allocation0]]
  $region54: #{tpu_custom_call.1} parent=0
    _
  %s12 = ssub.s32 1, %s10
  %s13 = scalar_select 0, %s12, %s10
  %v14 = vstv %s6
  %15 = vst [vmem:[#allocation3] sm:$0x1] %v14
  $region1: #{tpu_custom_call.1} parent=0
    #allocation4 [shape = 'u8[32768]{0}', space=vmem, size = 0x8000, scoped, tag = 'input window, operand 0, single buffered']
    #allocation5 [shape = 's32[1]{0}', space=sflag, size = 0x4, scoped, tag = 'scoped memory for tpu_custom_call.1']
    #allocation6 [shape = 'u8[16384]{0}', space=vmem, size = 0x4000, scoped, tag = 'input window, operand 3, single buffered']
    #allocation7 [shape = 's32[1]{0}', space=sflag, size = 0x4, scoped, tag = 'scoped memory for tpu_custom_call.1']
    %16 = vsyncpa [#allocation5], 0
    %17 = vsyncpa [#allocation7], 0
    // Predicated region
    $region2: #{tpu_custom_call.1} parent=1 // pred_check
      _
    $region3: #{tpu_custom_call.1} parent=1 // pred_check_branch
      %19 = sbr.rel (0) target = $region5
    $region4: #{tpu_custom_call.1} parent=1 // pred_region
      %s21 = ssub.s32 1024, 1024
      %22 = vsyncadd [#allocation5], %s21
      %s23 = sshll.u32 [#allocation4], 4
      %s24 = int_to_ptr.vmem [resolvable:$true] %s23
      %29 = dma.hbm_to_vmem [thread:$0]  %s0, 1024, %s24, [#allocation5], 128, 128, 8
    $region5: #{tpu_custom_call.1} parent=1 // pred_fallthru
      _
    // Predicated region
    $region6: #{tpu_custom_call.1} parent=1 // pred_check
      _
    $region7: #{tpu_custom_call.1} parent=1 // pred_check_branch
      %31 = sbr.rel (0) target = $region9
    $region8: #{tpu_custom_call.1} parent=1 // pred_region
      _
    $region9: #{tpu_custom_call.1} parent=1 // pred_fallthru
      _
    // Predicated region
    $region10: #{tpu_custom_call.1} parent=1 // pred_check
      _
    $region11: #{tpu_custom_call.1} parent=1 // pred_check_branch
      %33 = sbr.rel (0) target = $region13
    $region12: #{tpu_custom_call.1} parent=1 // pred_region
      _
    $region13: #{tpu_custom_call.1} parent=1 // pred_fallthru
      _
    // Predicated region
    $region14: #{tpu_custom_call.1} parent=1 // pred_check
      _
    $region15: #{tpu_custom_call.1} parent=1 // pred_check_branch
      %35 = sbr.rel (0) target = $region17
    $region16: #{tpu_custom_call.1} parent=1 // pred_region
      %s37 = ssub.s32 512, 512
      %38 = vsyncadd [#allocation7], %s37
      %s39 = sshll.u32 [#allocation6], 4
      %s40 = int_to_ptr.vmem [resolvable:$true] %s39
      %45 = dma.hbm_to_vmem [thread:$0]  %s3, 512, %s40, [#allocation7], 128, 128, 8
    $region17: #{tpu_custom_call.1} parent=1 // pred_fallthru
      _
    // Predicated region
    $region18: #{tpu_custom_call.1} parent=1 // pred_check
      _
    $region19: #{tpu_custom_call.1} parent=1 // pred_check_branch
      %47 = sbr.rel (0) target = $region21
    $region20: #{tpu_custom_call.1} parent=1 // pred_region
      _
    $region21: #{tpu_custom_call.1} parent=1 // pred_fallthru
      _
    // Predicated region
    $region22: #{tpu_custom_call.1} parent=1 // pred_check
      _
    $region23: #{tpu_custom_call.1} parent=1 // pred_check_branch
      %49 = sbr.rel (0) target = $region25
    $region24: #{tpu_custom_call.1} parent=1 // pred_region
      _
    $region25: #{tpu_custom_call.1} parent=1 // pred_fallthru
      _
    // Predicated region
    $region26: #{tpu_custom_call.1} parent=1 // pred_check
      _
    $region27: #{tpu_custom_call.1} parent=1 // pred_check_branch
      %51 = sbr.rel (0) target = $region29
    $region28: #{tpu_custom_call.1} parent=1 // pred_region
      _
    $region29: #{tpu_custom_call.1} parent=1 // pred_fallthru
      _
    // Predicated region
    $region30: #{tpu_custom_call.1} parent=1 // pred_check
      _
    $region31: #{tpu_custom_call.1} parent=1 // pred_check_branch
      %53 = sbr.rel (0) target = $region33
    $region32: #{tpu_custom_call.1} parent=1 // pred_region
      _
    $region33: #{tpu_custom_call.1} parent=1 // pred_fallthru
      _
    // Predicated region
    $region34: #{tpu_custom_call.1} parent=1 // pred_check
      _
    $region35: #{tpu_custom_call.1} parent=1 // pred_check_branch
      %55 = sbr.rel (0) target = $region37
    $region36: #{tpu_custom_call.1} parent=1 // pred_region
      _
    $region37: #{tpu_custom_call.1} parent=1 // pred_fallthru
      _
    // Predicated region
    $region38: #{tpu_custom_call.1} parent=1 // pred_check
      _
    $region39: #{tpu_custom_call.1} parent=1 // pred_check_branch
      %57 = sbr.rel (0) target = $region41
    $region40: #{tpu_custom_call.1} parent=1 // pred_region
      %58 = dma.done [#allocation5], 1024
    $region41: #{tpu_custom_call.1} parent=1 // pred_fallthru
      _
    // Predicated region
    $region42: #{tpu_custom_call.1} parent=1 // pred_check
      _
    $region43: #{tpu_custom_call.1} parent=1 // pred_check_branch
      %60 = sbr.rel (0) target = $region45
    $region44: #{tpu_custom_call.1} parent=1 // pred_region
      %61 = dma.done [#allocation7], 512
    $region45: #{tpu_custom_call.1} parent=1 // pred_fallthru
      _
    %v62 = vld [vmem:[%s2] sm:$0xff]
    %v63 = vld [vmem:[%s2 + $0x8] sm:$0xff]
    %v64 = vld [vmem:[%s2 + $0x10] sm:$0xff]
    %v65 = vld [vmem:[%s2 + $0x18] sm:$0xff]
    %v66 = vld [vmem:[%s4] sm:$0x1]
    %v67 = vld [vmem:[#allocation4] sm:$0xff]
    %v69 = vlaneseq
    %v70 = vshrl.u32 %v69, 7
    %v71 = vsub.s32 0, %v70
    %v72 = vrot.slane %v66, %v71
    %vm74 = vcmask 261120
    %v76 = vsel %vm74, %v67, 0
    %78 = vmatprep.subr.mxu0 0.0
    %79 = vmatpush1.msra.mxu0 0.0
    %80 = vmatprep.subr.mxu0 0.0
    %81 = vmatpush1.msra.mxu0 0.0
    %82 = vmatprep.subr.mxu0 0.0
    %83 = vmatpush1.msra.mxu0 0.0
    %84 = vmatprep.subr.mxu0 0.0
    %85 = vmatpush1.msra.mxu0 0.0
    %86 = vmatprep.subr.mxu0 0.0
    %87 = vmatpush1.msra.mxu0 0.0
    %88 = vmatprep.subr.mxu0 0.0
    %89 = vmatpush1.msra.mxu0 0.0
    %90 = vmatprep.subr.mxu0 0.0
    %91 = vmatpush1.msra.mxu0 0.0
    %92 = vmatprep.subr.mxu0 0.0
    %93 = vmatpush1.msra.mxu0 0.0
    %94 = vmatprep.subr.mxu0 0.0
    %95 = vmatpush1.msra.mxu0 0.0
    %96 = vmatprep.subr.mxu0 0.0
    %97 = vmatpush1.msra.mxu0 0.0
    %98 = vmatprep.subr.mxu0 0.0
    %99 = vmatpush1.msra.mxu0 0.0
    %100 = vmatprep.subr.mxu0 0.0
    %101 = vmatpush1.msra.mxu0 0.0
    %102 = vmatprep.subr.mxu0 0.0
    %103 = vmatpush1.msra.mxu0 %v65
    %104 = vmatprep.subr.mxu0 0.0
    %105 = vmatpush1.msra.mxu0 %v64
    %106 = vmatprep.subr.mxu0 0.0
    %107 = vmatpush1.msra.mxu0 %v63
    %108 = vmatprep.subr.mxu0 0.0
    %109 = vmatpush1.msra.mxu0 %v62
    %110 = vmatprep.subr.mxu0 0.0
    %111 = vmatpush2.msra.mxu0 0.0
    %112 = vmatprep.subr.mxu0 0.0
    %113 = vmatpush2.msra.mxu0 0.0
    %114 = vmatprep.subr.mxu0 0.0
    %115 = vmatpush2.msra.mxu0 0.0
    %116 = vmatprep.subr.mxu0 0.0
    %117 = vmatpush2.msra.mxu0 0.0
    %118 = vmatprep.subr.mxu0 0.0
    %119 = vmatpush2.msra.mxu0 0.0
    %120 = vmatprep.subr.mxu0 0.0
    %121 = vmatpush2.msra.mxu0 0.0
    %122 = vmatprep.subr.mxu0 0.0
    %123 = vmatpush2.msra.mxu0 0.0
    %124 = vmatprep.subr.mxu0 0.0
    %125 = vmatpush2.msra.mxu0 0.0
    %126 = vmatprep.subr.mxu0 0.0
    %127 = vmatpush2.msra.mxu0 0.0
    %128 = vmatprep.subr.mxu0 0.0
    %129 = vmatpush2.msra.mxu0 0.0
    %130 = vmatprep.subr.mxu0 0.0
    %131 = vmatpush2.msra.mxu0 0.0
    %132 = vmatprep.subr.mxu0 0.0
    %133 = vmatpush2.msra.mxu0 0.0
    %134 = vmatprep.subr.mxu0 0.0
    %135 = vmatpush2.msra.mxu0 0.0
    %136 = vmatprep.subr.mxu0 0.0
    %137 = vmatpush2.msra.mxu0 0.0
    %138 = vmatprep.subr.mxu0 0.0
    %139 = vmatpush2.msra.mxu0 0.0
    %140 = vmatprep.subr.mxu0 0.0
    %141 = vmatpush2.msra.mxu0 0.0
    %142 = vmatprep.mubr.f32.mxu0 0.0
    %143 = vmatmul.mubr.f32.gmra.mxu0 %v76
    %v144 = vpop.f32.mrf.mxu0
    %v145 = vadd.f32 %v72, %v144
    %v146 = vpop.f32.mrf.mxu0
    %147 = vdwg.mxu0
    %148 = vst [vmem:[#allocation2] sm:$0xff] %v145
    %s149 = scalar_lea.vmem [#allocation4], 8
    %v150 = vld [vmem:[%s149] sm:$0xff]
    %v152 = vsel %vm74, %v150, 0
    %154 = vmatprep.subr.mxu0 0.0
    %155 = vmatpush1.msra.mxu0 0.0
    %156 = vmatprep.subr.mxu0 0.0
    %157 = vmatpush1.msra.mxu0 0.0
    %158 = vmatprep.subr.mxu0 0.0
    %159 = vmatpush1.msra.mxu0 0.0
    %160 = vmatprep.subr.mxu0 0.0
    %161 = vmatpush1.msra.mxu0 0.0
    %162 = vmatprep.subr.mxu0 0.0
    %163 = vmatpush1.msra.mxu0 0.0
    %164 = vmatprep.subr.mxu0 0.0
    %165 = vmatpush1.msra.mxu0 0.0
    %166 = vmatprep.subr.mxu0 0.0
    %167 = vmatpush1.msra.mxu0 0.0
    %168 = vmatprep.subr.mxu0 0.0
    %169 = vmatpush1.msra.mxu0 0.0
    %170 = vmatprep.subr.mxu0 0.0
    %171 = vmatpush1.msra.mxu0 0.0
    %172 = vmatprep.subr.mxu0 0.0
    %173 = vmatpush1.msra.mxu0 0.0
    %174 = vmatprep.subr.mxu0 0.0
    %175 = vmatpush1.msra.mxu0 0.0
    %176 = vmatprep.subr.mxu0 0.0
    %177 = vmatpush1.msra.mxu0 0.0
    %178 = vmatprep.subr.mxu0 0.0
    %179 = vmatpush1.msra.mxu0 %v65
    %180 = vmatprep.subr.mxu0 0.0
    %181 = vmatpush1.msra.mxu0 %v64
    %182 = vmatprep.subr.mxu0 0.0
    %183 = vmatpush1.msra.mxu0 %v63
    %184 = vmatprep.subr.mxu0 0.0
    %185 = vmatpush1.msra.mxu0 %v62
    %186 = vmatprep.subr.mxu0 0.0
    %187 = vmatpush2.msra.mxu0 0.0
    %188 = vmatprep.subr.mxu0 0.0
    %189 = vmatpush2.msra.mxu0 0.0
    %190 = vmatprep.subr.mxu0 0.0
    %191 = vmatpush2.msra.mxu0 0.0
    %192 = vmatprep.subr.mxu0 0.0
    %193 = vmatpush2.msra.mxu0 0.0
    %194 = vmatprep.subr.mxu0 0.0
    %195 = vmatpush2.msra.mxu0 0.0
    %196 = vmatprep.subr.mxu0 0.0
    %197 = vmatpush2.msra.mxu0 0.0
    %198 = vmatprep.subr.mxu0 0.0
    %199 = vmatpush2.msra.mxu0 0.0
    %200 = vmatprep.subr.mxu0 0.0
    %201 = vmatpush2.msra.mxu0 0.0
    %202 = vmatprep.subr.mxu0 0.0
    %203 = vmatpush2.msra.mxu0 0.0
    %204 = vmatprep.subr.mxu0 0.0
    %205 = vmatpush2.msra.mxu0 0.0
    %206 = vmatprep.subr.mxu0 0.0
    %207 = vmatpush2.msra.mxu0 0.0
    %208 = vmatprep.subr.mxu0 0.0
    %209 = vmatpush2.msra.mxu0 0.0
    %210 = vmatprep.subr.mxu0 0.0
    %211 = vmatpush2.msra.mxu0 0.0
    %212 = vmatprep.subr.mxu0 0.0
    %213 = vmatpush2.msra.mxu0 0.0
    %214 = vmatprep.subr.mxu0 0.0
    %215 = vmatpush2.msra.mxu0 0.0
    %216 = vmatprep.subr.mxu0 0.0
    %217 = vmatpush2.msra.mxu0 0.0
    %218 = vmatprep.mubr.f32.mxu0 0.0
    %219 = vmatmul.mubr.f32.gmra.mxu0 %v152
    %v220 = vpop.f32.mrf.mxu0
    %v221 = vadd.f32 %v72, %v220
    %v222 = vpop.f32.mrf.mxu0
    %223 = vdwg.mxu0
    %s224 = scalar_lea.vmem [#allocation2], 8
    %225 = vst [vmem:[%s224] sm:$0xff] %v221
    %s226 = scalar_lea.vmem [#allocation4], 16
    %v227 = vld [vmem:[%s226] sm:$0xff]
    %v229 = vsel %vm74, %v227, 0
    %231 = vmatprep.subr.mxu0 0.0
    %232 = vmatpush1.msra.mxu0 0.0
    %233 = vmatprep.subr.mxu0 0.0
    %234 = vmatpush1.msra.mxu0 0.0
    %235 = vmatprep.subr.mxu0 0.0
    %236 = vmatpush1.msra.mxu0 0.0
    %237 = vmatprep.subr.mxu0 0.0
    %238 = vmatpush1.msra.mxu0 0.0
    %239 = vmatprep.subr.mxu0 0.0
    %240 = vmatpush1.msra.mxu0 0.0
    %241 = vmatprep.subr.mxu0 0.0
    %242 = vmatpush1.msra.mxu0 0.0
    %243 = vmatprep.subr.mxu0 0.0
    %244 = vmatpush1.msra.mxu0 0.0
    %245 = vmatprep.subr.mxu0 0.0
    %246 = vmatpush1.msra.mxu0 0.0
    %247 = vmatprep.subr.mxu0 0.0
    %248 = vmatpush1.msra.mxu0 0.0
    %249 = vmatprep.subr.mxu0 0.0
    %250 = vmatpush1.msra.mxu0 0.0
    %251 = vmatprep.subr.mxu0 0.0
    %252 = vmatpush1.msra.mxu0 0.0
    %253 = vmatprep.subr.mxu0 0.0
    %254 = vmatpush1.msra.mxu0 0.0
    %255 = vmatprep.subr.mxu0 0.0
    %256 = vmatpush1.msra.mxu0 %v65
    %257 = vmatprep.subr.mxu0 0.0
    %258 = vmatpush1.msra.mxu0 %v64
    %259 = vmatprep.subr.mxu0 0.0
    %260 = vmatpush1.msra.mxu0 %v63
    %261 = vmatprep.subr.mxu0 0.0
    %262 = vmatpush1.msra.mxu0 %v62
    %263 = vmatprep.subr.mxu0 0.0
    %264 = vmatpush2.msra.mxu0 0.0
    %265 = vmatprep.subr.mxu0 0.0
    %266 = vmatpush2.msra.mxu0 0.0
    %267 = vmatprep.subr.mxu0 0.0
    %268 = vmatpush2.msra.mxu0 0.0
    %269 = vmatprep.subr.mxu0 0.0
    %270 = vmatpush2.msra.mxu0 0.0
    %271 = vmatprep.subr.mxu0 0.0
    %272 = vmatpush2.msra.mxu0 0.0
    %273 = vmatprep.subr.mxu0 0.0
    %274 = vmatpush2.msra.mxu0 0.0
    %275 = vmatprep.subr.mxu0 0.0
    %276 = vmatpush2.msra.mxu0 0.0
    %277 = vmatprep.subr.mxu0 0.0
    %278 = vmatpush2.msra.mxu0 0.0
    %279 = vmatprep.subr.mxu0 0.0
    %280 = vmatpush2.msra.mxu0 0.0
    %281 = vmatprep.subr.mxu0 0.0
    %282 = vmatpush2.msra.mxu0 0.0
    %283 = vmatprep.subr.mxu0 0.0
    %284 = vmatpush2.msra.mxu0 0.0
    %285 = vmatprep.subr.mxu0 0.0
    %286 = vmatpush2.msra.mxu0 0.0
    %287 = vmatprep.subr.mxu0 0.0
    %288 = vmatpush2.msra.mxu0 0.0
    %289 = vmatprep.subr.mxu0 0.0
    %290 = vmatpush2.msra.mxu0 0.0
    %291 = vmatprep.subr.mxu0 0.0
    %292 = vmatpush2.msra.mxu0 0.0
    %293 = vmatprep.subr.mxu0 0.0
    %294 = vmatpush2.msra.mxu0 0.0
    %295 = vmatprep.mubr.f32.mxu0 0.0
    %296 = vmatmul.mubr.f32.gmra.mxu0 %v229
    %v297 = vpop.f32.mrf.mxu0
    %v298 = vadd.f32 %v72, %v297
    %v299 = vpop.f32.mrf.mxu0
    %300 = vdwg.mxu0
    %s301 = scalar_lea.vmem [#allocation2], 16
    %302 = vst [vmem:[%s301] sm:$0xff] %v298
    %s303 = scalar_lea.vmem [#allocation4], 24
    %v304 = vld [vmem:[%s303] sm:$0xff]
    %v306 = vsel %vm74, %v304, 0
    %308 = vmatprep.subr.mxu0 0.0
    %309 = vmatpush1.msra.mxu0 0.0
    %310 = vmatprep.subr.mxu0 0.0
    %311 = vmatpush1.msra.mxu0 0.0
    %312 = vmatprep.subr.mxu0 0.0
    %313 = vmatpush1.msra.mxu0 0.0
    %314 = vmatprep.subr.mxu0 0.0
    %315 = vmatpush1.msra.mxu0 0.0
    %316 = vmatprep.subr.mxu0 0.0
    %317 = vmatpush1.msra.mxu0 0.0
    %318 = vmatprep.subr.mxu0 0.0
    %319 = vmatpush1.msra.mxu0 0.0
    %320 = vmatprep.subr.mxu0 0.0
    %321 = vmatpush1.msra.mxu0 0.0
    %322 = vmatprep.subr.mxu0 0.0
    %323 = vmatpush1.msra.mxu0 0.0
    %324 = vmatprep.subr.mxu0 0.0
    %325 = vmatpush1.msra.mxu0 0.0
    %326 = vmatprep.subr.mxu0 0.0
    %327 = vmatpush1.msra.mxu0 0.0
    %328 = vmatprep.subr.mxu0 0.0
    %329 = vmatpush1.msra.mxu0 0.0
    %330 = vmatprep.subr.mxu0 0.0
    %331 = vmatpush1.msra.mxu0 0.0
    %332 = vmatprep.subr.mxu0 0.0
    %333 = vmatpush1.msra.mxu0 %v65
    %334 = vmatprep.subr.mxu0 0.0
    %335 = vmatpush1.msra.mxu0 %v64
    %336 = vmatprep.subr.mxu0 0.0
    %337 = vmatpush1.msra.mxu0 %v63
    %338 = vmatprep.subr.mxu0 0.0
    %339 = vmatpush1.msra.mxu0 %v62
    %340 = vmatprep.subr.mxu0 0.0
    %341 = vmatpush2.msra.mxu0 0.0
    %342 = vmatprep.subr.mxu0 0.0
    %343 = vmatpush2.msra.mxu0 0.0
    %344 = vmatprep.subr.mxu0 0.0
    %345 = vmatpush2.msra.mxu0 0.0
    %346 = vmatprep.subr.mxu0 0.0
    %347 = vmatpush2.msra.mxu0 0.0
    %348 = vmatprep.subr.mxu0 0.0
    %349 = vmatpush2.msra.mxu0 0.0
    %350 = vmatprep.subr.mxu0 0.0
    %351 = vmatpush2.msra.mxu0 0.0
    %352 = vmatprep.subr.mxu0 0.0
    %353 = vmatpush2.msra.mxu0 0.0
    %354 = vmatprep.subr.mxu0 0.0
    %355 = vmatpush2.msra.mxu0 0.0
    %356 = vmatprep.subr.mxu0 0.0
    %357 = vmatpush2.msra.mxu0 0.0
    %358 = vmatprep.subr.mxu0 0.0
    %359 = vmatpush2.msra.mxu0 0.0
    %360 = vmatprep.subr.mxu0 0.0
    %361 = vmatpush2.msra.mxu0 0.0
    %362 = vmatprep.subr.mxu0 0.0
    %363 = vmatpush2.msra.mxu0 0.0
    %364 = vmatprep.subr.mxu0 0.0
    %365 = vmatpush2.msra.mxu0 0.0
    %366 = vmatprep.subr.mxu0 0.0
    %367 = vmatpush2.msra.mxu0 0.0
    %368 = vmatprep.subr.mxu0 0.0
    %369 = vmatpush2.msra.mxu0 0.0
    %370 = vmatprep.subr.mxu0 0.0
    %371 = vmatpush2.msra.mxu0 0.0
    %372 = vmatprep.mubr.f32.mxu0 0.0
    %373 = vmatmul.mubr.f32.gmra.mxu0 %v306
    %v374 = vpop.f32.mrf.mxu0
    %v375 = vadd.f32 %v72, %v374
    %v376 = vpop.f32.mrf.mxu0
    %377 = vdwg.mxu0
    %s378 = scalar_lea.vmem [#allocation2], 24
    %379 = vst [vmem:[%s378] sm:$0xff] %v375
    %s380 = scalar_lea.vmem [#allocation4], 32
    %v381 = vld [vmem:[%s380] sm:$0xff]
    %v383 = vsel %vm74, %v381, 0
    %385 = vmatprep.subr.mxu0 0.0
    %386 = vmatpush1.msra.mxu0 0.0
    %387 = vmatprep.subr.mxu0 0.0
    %388 = vmatpush1.msra.mxu0 0.0
    %389 = vmatprep.subr.mxu0 0.0
    %390 = vmatpush1.msra.mxu0 0.0
    %391 = vmatprep.subr.mxu0 0.0
    %392 = vmatpush1.msra.mxu0 0.0
    %393 = vmatprep.subr.mxu0 0.0
    %394 = vmatpush1.msra.mxu0 0.0
    %395 = vmatprep.subr.mxu0 0.0
    %396 = vmatpush1.msra.mxu0 0.0
    %397 = vmatprep.subr.mxu0 0.0
    %398 = vmatpush1.msra.mxu0 0.0
    %399 = vmatprep.subr.mxu0 0.0
    %400 = vmatpush1.msra.mxu0 0.0
    %401 = vmatprep.subr.mxu0 0.0
    %402 = vmatpush1.msra.mxu0 0.0
    %403 = vmatprep.subr.mxu0 0.0
    %404 = vmatpush1.msra.mxu0 0.0
    %405 = vmatprep.subr.mxu0 0.0
    %406 = vmatpush1.msra.mxu0 0.0
    %407 = vmatprep.subr.mxu0 0.0
    %408 = vmatpush1.msra.mxu0 0.0
    %409 = vmatprep.subr.mxu0 0.0
    %410 = vmatpush1.msra.mxu0 %v65
    %411 = vmatprep.subr.mxu0 0.0
    %412 = vmatpush1.msra.mxu0 %v64
    %413 = vmatprep.subr.mxu0 0.0
    %414 = vmatpush1.msra.mxu0 %v63
    %415 = vmatprep.subr.mxu0 0.0
    %416 = vmatpush1.msra.mxu0 %v62
    %417 = vmatprep.subr.mxu0 0.0
    %418 = vmatpush2.msra.mxu0 0.0
    %419 = vmatprep.subr.mxu0 0.0
    %420 = vmatpush2.msra.mxu0 0.0
    %421 = vmatprep.subr.mxu0 0.0
    %422 = vmatpush2.msra.mxu0 0.0
    %423 = vmatprep.subr.mxu0 0.0
    %424 = vmatpush2.msra.mxu0 0.0
    %425 = vmatprep.subr.mxu0 0.0
    %426 = vmatpush2.msra.mxu0 0.0
    %427 = vmatprep.subr.mxu0 0.0
    %428 = vmatpush2.msra.mxu0 0.0
    %429 = vmatprep.subr.mxu0 0.0
    %430 = vmatpush2.msra.mxu0 0.0
    %431 = vmatprep.subr.mxu0 0.0
    %432 = vmatpush2.msra.mxu0 0.0
    %433 = vmatprep.subr.mxu0 0.0
    %434 = vmatpush2.msra.mxu0 0.0
    %435 = vmatprep.subr.mxu0 0.0
    %436 = vmatpush2.msra.mxu0 0.0
    %437 = vmatprep.subr.mxu0 0.0
    %438 = vmatpush2.msra.mxu0 0.0
    %439 = vmatprep.subr.mxu0 0.0
    %440 = vmatpush2.msra.mxu0 0.0
    %441 = vmatprep.subr.mxu0 0.0
    %442 = vmatpush2.msra.mxu0 0.0
    %443 = vmatprep.subr.mxu0 0.0
    %444 = vmatpush2.msra.mxu0 0.0
    %445 = vmatprep.subr.mxu0 0.0
    %446 = vmatpush2.msra.mxu0 0.0
    %447 = vmatprep.subr.mxu0 0.0
    %448 = vmatpush2.msra.mxu0 0.0
    %449 = vmatprep.mubr.f32.mxu0 0.0
    %450 = vmatmul.mubr.f32.gmra.mxu0 %v383
    %v451 = vpop.f32.mrf.mxu0
    %v452 = vadd.f32 %v72, %v451
    %v453 = vpop.f32.mrf.mxu0
    %454 = vdwg.mxu0
    %s455 = scalar_lea.vmem [#allocation2], 32
    %456 = vst [vmem:[%s455] sm:$0xff] %v452
    %s457 = scalar_lea.vmem [#allocation4], 40
    %v458 = vld [vmem:[%s457] sm:$0xff]
    %v460 = vsel %vm74, %v458, 0
    %462 = vmatprep.subr.mxu0 0.0
    %463 = vmatpush1.msra.mxu0 0.0
    %464 = vmatprep.subr.mxu0 0.0
    %465 = vmatpush1.msra.mxu0 0.0
    %466 = vmatprep.subr.mxu0 0.0
    %467 = vmatpush1.msra.mxu0 0.0
    %468 = vmatprep.subr.mxu0 0.0
    %469 = vmatpush1.msra.mxu0 0.0
    %470 = vmatprep.subr.mxu0 0.0
    %471 = vmatpush1.msra.mxu0 0.0
    %472 = vmatprep.subr.mxu0 0.0
    %473 = vmatpush1.msra.mxu0 0.0
    %474 = vmatprep.subr.mxu0 0.0
    %475 = vmatpush1.msra.mxu0 0.0
    %476 = vmatprep.subr.mxu0 0.0
    %477 = vmatpush1.msra.mxu0 0.0
    %478 = vmatprep.subr.mxu0 0.0
    %479 = vmatpush1.msra.mxu0 0.0
    %480 = vmatprep.subr.mxu0 0.0
    %481 = vmatpush1.msra.mxu0 0.0
    %482 = vmatprep.subr.mxu0 0.0
    %483 = vmatpush1.msra.mxu0 0.0
    %484 = vmatprep.subr.mxu0 0.0
    %485 = vmatpush1.msra.mxu0 0.0
    %486 = vmatprep.subr.mxu0 0.0
    %487 = vmatpush1.msra.mxu0 %v65
    %488 = vmatprep.subr.mxu0 0.0
    %489 = vmatpush1.msra.mxu0 %v64
    %490 = vmatprep.subr.mxu0 0.0
    %491 = vmatpush1.msra.mxu0 %v63
    %492 = vmatprep.subr.mxu0 0.0
    %493 = vmatpush1.msra.mxu0 %v62
    %494 = vmatprep.subr.mxu0 0.0
    %495 = vmatpush2.msra.mxu0 0.0
    %496 = vmatprep.subr.mxu0 0.0
    %497 = vmatpush2.msra.mxu0 0.0
    %498 = vmatprep.subr.mxu0 0.0
    %499 = vmatpush2.msra.mxu0 0.0
    %500 = vmatprep.subr.mxu0 0.0
    %501 = vmatpush2.msra.mxu0 0.0
    %502 = vmatprep.subr.mxu0 0.0
    %503 = vmatpush2.msra.mxu0 0.0
    %504 = vmatprep.subr.mxu0 0.0
    %505 = vmatpush2.msra.mxu0 0.0
    %506 = vmatprep.subr.mxu0 0.0
    %507 = vmatpush2.msra.mxu0 0.0
    %508 = vmatprep.subr.mxu0 0.0
    %509 = vmatpush2.msra.mxu0 0.0
    %510 = vmatprep.subr.mxu0 0.0
    %511 = vmatpush2.msra.mxu0 0.0
    %512 = vmatprep.subr.mxu0 0.0
    %513 = vmatpush2.msra.mxu0 0.0
    %514 = vmatprep.subr.mxu0 0.0
    %515 = vmatpush2.msra.mxu0 0.0
    %516 = vmatprep.subr.mxu0 0.0
    %517 = vmatpush2.msra.mxu0 0.0
    %518 = vmatprep.subr.mxu0 0.0
    %519 = vmatpush2.msra.mxu0 0.0
    %520 = vmatprep.subr.mxu0 0.0
    %521 = vmatpush2.msra.mxu0 0.0
    %522 = vmatprep.subr.mxu0 0.0
    %523 = vmatpush2.msra.mxu0 0.0
    %524 = vmatprep.subr.mxu0 0.0
    %525 = vmatpush2.msra.mxu0 0.0
    %526 = vmatprep.mubr.f32.mxu0 0.0
    %527 = vmatmul.mubr.f32.gmra.mxu0 %v460
    %v528 = vpop.f32.mrf.mxu0
    %v529 = vadd.f32 %v72, %v528
    %v530 = vpop.f32.mrf.mxu0
    %531 = vdwg.mxu0
    %s532 = scalar_lea.vmem [#allocation2], 40
    %533 = vst [vmem:[%s532] sm:$0xff] %v529
    %s534 = scalar_lea.vmem [#allocation4], 48
    %v535 = vld [vmem:[%s534] sm:$0xff]
    %v537 = vsel %vm74, %v535, 0
    %539 = vmatprep.subr.mxu0 0.0
    %540 = vmatpush1.msra.mxu0 0.0
    %541 = vmatprep.subr.mxu0 0.0
    %542 = vmatpush1.msra.mxu0 0.0
    %543 = vmatprep.subr.mxu0 0.0
    %544 = vmatpush1.msra.mxu0 0.0
    %545 = vmatprep.subr.mxu0 0.0
    %546 = vmatpush1.msra.mxu0 0.0
    %547 = vmatprep.subr.mxu0 0.0
    %548 = vmatpush1.msra.mxu0 0.0
    %549 = vmatprep.subr.mxu0 0.0
    %550 = vmatpush1.msra.mxu0 0.0
    %551 = vmatprep.subr.mxu0 0.0
    %552 = vmatpush1.msra.mxu0 0.0
    %553 = vmatprep.subr.mxu0 0.0
    %554 = vmatpush1.msra.mxu0 0.0
    %555 = vmatprep.subr.mxu0 0.0
    %556 = vmatpush1.msra.mxu0 0.0
    %557 = vmatprep.subr.mxu0 0.0
    %558 = vmatpush1.msra.mxu0 0.0
    %559 = vmatprep.subr.mxu0 0.0
    %560 = vmatpush1.msra.mxu0 0.0
    %561 = vmatprep.subr.mxu0 0.0
    %562 = vmatpush1.msra.mxu0 0.0
    %563 = vmatprep.subr.mxu0 0.0
    %564 = vmatpush1.msra.mxu0 %v65
    %565 = vmatprep.subr.mxu0 0.0
    %566 = vmatpush1.msra.mxu0 %v64
    %567 = vmatprep.subr.mxu0 0.0
    %568 = vmatpush1.msra.mxu0 %v63
    %569 = vmatprep.subr.mxu0 0.0
    %570 = vmatpush1.msra.mxu0 %v62
    %571 = vmatprep.subr.mxu0 0.0
    %572 = vmatpush2.msra.mxu0 0.0
    %573 = vmatprep.subr.mxu0 0.0
    %574 = vmatpush2.msra.mxu0 0.0
    %575 = vmatprep.subr.mxu0 0.0
    %576 = vmatpush2.msra.mxu0 0.0
    %577 = vmatprep.subr.mxu0 0.0
    %578 = vmatpush2.msra.mxu0 0.0
    %579 = vmatprep.subr.mxu0 0.0
    %580 = vmatpush2.msra.mxu0 0.0
    %581 = vmatprep.subr.mxu0 0.0
    %582 = vmatpush2.msra.mxu0 0.0
    %583 = vmatprep.subr.mxu0 0.0
    %584 = vmatpush2.msra.mxu0 0.0
    %585 = vmatprep.subr.mxu0 0.0
    %586 = vmatpush2.msra.mxu0 0.0
    %587 = vmatprep.subr.mxu0 0.0
    %588 = vmatpush2.msra.mxu0 0.0
    %589 = vmatprep.subr.mxu0 0.0
    %590 = vmatpush2.msra.mxu0 0.0
    %591 = vmatprep.subr.mxu0 0.0
    %592 = vmatpush2.msra.mxu0 0.0
    %593 = vmatprep.subr.mxu0 0.0
    %594 = vmatpush2.msra.mxu0 0.0
    %595 = vmatprep.subr.mxu0 0.0
    %596 = vmatpush2.msra.mxu0 0.0
    %597 = vmatprep.subr.mxu0 0.0
    %598 = vmatpush2.msra.mxu0 0.0
    %599 = vmatprep.subr.mxu0 0.0
    %600 = vmatpush2.msra.mxu0 0.0
    %601 = vmatprep.subr.mxu0 0.0
    %602 = vmatpush2.msra.mxu0 0.0
    %603 = vmatprep.mubr.f32.mxu0 0.0
    %604 = vmatmul.mubr.f32.gmra.mxu0 %v537
    %v605 = vpop.f32.mrf.mxu0
    %v606 = vadd.f32 %v72, %v605
    %v607 = vpop.f32.mrf.mxu0
    %608 = vdwg.mxu0
    %s609 = scalar_lea.vmem [#allocation2], 48
    %610 = vst [vmem:[%s609] sm:$0xff] %v606
    %s611 = scalar_lea.vmem [#allocation4], 56
    %v612 = vld [vmem:[%s611] sm:$0xff]
    %v614 = vsel %vm74, %v612, 0
    %616 = vmatprep.subr.mxu0 0.0
    %617 = vmatpush1.msra.mxu0 0.0
    %618 = vmatprep.subr.mxu0 0.0
    %619 = vmatpush1.msra.mxu0 0.0
    %620 = vmatprep.subr.mxu0 0.0
    %621 = vmatpush1.msra.mxu0 0.0
    %622 = vmatprep.subr.mxu0 0.0
    %623 = vmatpush1.msra.mxu0 0.0
    %624 = vmatprep.subr.mxu0 0.0
    %625 = vmatpush1.msra.mxu0 0.0
    %626 = vmatprep.subr.mxu0 0.0
    %627 = vmatpush1.msra.mxu0 0.0
    %628 = vmatprep.subr.mxu0 0.0
    %629 = vmatpush1.msra.mxu0 0.0
    %630 = vmatprep.subr.mxu0 0.0
    %631 = vmatpush1.msra.mxu0 0.0
    %632 = vmatprep.subr.mxu0 0.0
    %633 = vmatpush1.msra.mxu0 0.0
    %634 = vmatprep.subr.mxu0 0.0
    %635 = vmatpush1.msra.mxu0 0.0
    %636 = vmatprep.subr.mxu0 0.0
    %637 = vmatpush1.msra.mxu0 0.0
    %638 = vmatprep.subr.mxu0 0.0
    %639 = vmatpush1.msra.mxu0 0.0
    %640 = vmatprep.subr.mxu0 0.0
    %641 = vmatpush1.msra.mxu0 %v65
    %642 = vmatprep.subr.mxu0 0.0
    %643 = vmatpush1.msra.mxu0 %v64
    %644 = vmatprep.subr.mxu0 0.0
    %645 = vmatpush1.msra.mxu0 %v63
    %646 = vmatprep.subr.mxu0 0.0
    %647 = vmatpush1.msra.mxu0 %v62
    %648 = vmatprep.subr.mxu0 0.0
    %649 = vmatpush2.msra.mxu0 0.0
    %650 = vmatprep.subr.mxu0 0.0
    %651 = vmatpush2.msra.mxu0 0.0
    %652 = vmatprep.subr.mxu0 0.0
    %653 = vmatpush2.msra.mxu0 0.0
    %654 = vmatprep.subr.mxu0 0.0
    %655 = vmatpush2.msra.mxu0 0.0
    %656 = vmatprep.subr.mxu0 0.0
    %657 = vmatpush2.msra.mxu0 0.0
    %658 = vmatprep.subr.mxu0 0.0
    %659 = vmatpush2.msra.mxu0 0.0
    %660 = vmatprep.subr.mxu0 0.0
    %661 = vmatpush2.msra.mxu0 0.0
    %662 = vmatprep.subr.mxu0 0.0
    %663 = vmatpush2.msra.mxu0 0.0
    %664 = vmatprep.subr.mxu0 0.0
    %665 = vmatpush2.msra.mxu0 0.0
    %666 = vmatprep.subr.mxu0 0.0
    %667 = vmatpush2.msra.mxu0 0.0
    %668 = vmatprep.subr.mxu0 0.0
    %669 = vmatpush2.msra.mxu0 0.0
    %670 = vmatprep.subr.mxu0 0.0
    %671 = vmatpush2.msra.mxu0 0.0
    %672 = vmatprep.subr.mxu0 0.0
    %673 = vmatpush2.msra.mxu0 0.0
    %674 = vmatprep.subr.mxu0 0.0
    %675 = vmatpush2.msra.mxu0 0.0
    %676 = vmatprep.subr.mxu0 0.0
    %677 = vmatpush2.msra.mxu0 0.0
    %678 = vmatprep.subr.mxu0 0.0
    %679 = vmatpush2.msra.mxu0 0.0
    %680 = vmatprep.mubr.f32.mxu0 0.0
    %681 = vmatmul.mubr.f32.gmra.mxu0 %v614
    %v682 = vpop.f32.mrf.mxu0
    %v683 = vadd.f32 %v72, %v682
    %v684 = vpop.f32.mrf.mxu0
    %685 = vdwg.mxu0
    %s686 = scalar_lea.vmem [#allocation2], 56
    %687 = vst [vmem:[%s686] sm:$0xff] %v683
    %v688 = vld [vmem:[#allocation6] sm:$0xff]
    %v689 = vld [vmem:[#allocation6 + $0x8] sm:$0xff]
    %v690 = vld [vmem:[#allocation6 + $0x10] sm:$0xff]
    %v691 = vld [vmem:[#allocation6 + $0x18] sm:$0xff]
    %v692 = vld [vmem:[%s5] sm:$0x1]
    %v693 = vld [vmem:[#allocation3] sm:$0x1]
    %v694 = vld [vmem:[%s1] sm:$0xff]
    %v695 = vld [vmem:[#allocation2] sm:$0xff]
    %v697 = vsel %vm74, 0.0, 0
    %699 = vmatprep.subr.mxu0 0.0
    %700 = vmatpush1.msra.mxu0 0.0
    %701 = vmatprep.subr.mxu0 0.0
    %702 = vmatpush1.msra.mxu0 0.0
    %703 = vmatprep.subr.mxu0 0.0
    %704 = vmatpush1.msra.mxu0 0.0
    %705 = vmatprep.subr.mxu0 0.0
    %706 = vmatpush1.msra.mxu0 0.0
    %707 = vmatprep.subr.mxu0 0.0
    %708 = vmatpush1.msra.mxu0 0.0
    %709 = vmatprep.subr.mxu0 0.0
    %710 = vmatpush1.msra.mxu0 0.0
    %711 = vmatprep.subr.mxu0 0.0
    %712 = vmatpush1.msra.mxu0 0.0
    %713 = vmatprep.subr.mxu0 0.0
    %714 = vmatpush1.msra.mxu0 0.0
    %715 = vmatprep.subr.mxu0 0.0
    %716 = vmatpush1.msra.mxu0 0.0
    %717 = vmatprep.subr.mxu0 0.0
    %718 = vmatpush1.msra.mxu0 0.0
    %719 = vmatprep.subr.mxu0 0.0
    %720 = vmatpush1.msra.mxu0 0.0
    %721 = vmatprep.subr.mxu0 0.0
    %722 = vmatpush1.msra.mxu0 0.0
    %723 = vmatprep.subr.mxu0 0.0
    %724 = vmatpush1.msra.mxu0 %v691
    %725 = vmatprep.subr.mxu0 0.0
    %726 = vmatpush1.msra.mxu0 %v690
    %727 = vmatprep.subr.mxu0 0.0
    %728 = vmatpush1.msra.mxu0 %v689
    %729 = vmatprep.subr.mxu0 0.0
    %730 = vmatpush1.msra.mxu0 %v688
    %731 = vmatprep.subr.mxu0 0.0
    %732 = vmatpush2.msra.mxu0 0.0
    %733 = vmatprep.subr.mxu0 0.0
    %734 = vmatpush2.msra.mxu0 0.0
    %735 = vmatprep.subr.mxu0 0.0
    %736 = vmatpush2.msra.mxu0 0.0
    %737 = vmatprep.subr.mxu0 0.0
    %738 = vmatpush2.msra.mxu0 0.0
    %739 = vmatprep.subr.mxu0 0.0
    %740 = vmatpush2.msra.mxu0 0.0
    %741 = vmatprep.subr.mxu0 0.0
    %742 = vmatpush2.msra.mxu0 0.0
    %743 = vmatprep.subr.mxu0 0.0
    %744 = vmatpush2.msra.mxu0 0.0
    %745 = vmatprep.subr.mxu0 0.0
    %746 = vmatpush2.msra.mxu0 0.0
    %747 = vmatprep.subr.mxu0 0.0
    %748 = vmatpush2.msra.mxu0 0.0
    %749 = vmatprep.subr.mxu0 0.0
    %750 = vmatpush2.msra.mxu0 0.0
    %751 = vmatprep.subr.mxu0 0.0
    %752 = vmatpush2.msra.mxu0 0.0
    %753 = vmatprep.subr.mxu0 0.0
    %754 = vmatpush2.msra.mxu0 0.0
    %755 = vmatprep.subr.mxu0 0.0
    %756 = vmatpush2.msra.mxu0 0.0
    %757 = vmatprep.subr.mxu0 0.0
    %758 = vmatpush2.msra.mxu0 0.0
    %759 = vmatprep.subr.mxu0 0.0
    %760 = vmatpush2.msra.mxu0 0.0
    %761 = vmatprep.subr.mxu0 0.0
    %762 = vmatpush2.msra.mxu0 0.0
    %763 = vmatprep.mubr.f32.mxu0 0.0
    %764 = vmatmul.mubr.f32.gmra.mxu0 %v697
    %v765 = vpop.f32.mrf.mxu0
    %v766 = vadd.f32 0.0, %v765
    %v767 = vpop.f32.mrf.mxu0
    %768 = vdwg.mxu0
    %v769 = vadd.f32 %v695, %v766
    %v770 = vxor.u32 %v769, 2147483648
    %v771 = vmul.f32 %v770, 1.442695
    %v772 = vpow.pop %v771
    %v773 = vadd.f32 %v772, 1.0
    %v774 = vrcp.pop %v773
    %v775 = vmul.f32 1.0, %v774
    %v776 = vtanh.pop %v769
    %v777 = vmul.f32 %v775, 0.0
    %779 = vrot.lane.b32.xlu0 %v776, 32
    %v780 = vpop.permute.xlu0 %779
    %v782 = vmul.f32 %v775, %v780
    %784 = vrot.lane.b32.xlu0 %v782, 32
    %v785 = vpop.permute.xlu0 %784
    %v787 = vadd.f32 %v777, %v785
    %v788 = vtanh.pop %v787
    %790 = vrot.lane.b32.xlu0 %v788, 32
    %v791 = vpop.permute.xlu0 %790
    %v793 = vmul.f32 %v775, %v791
    %vm794 = vcmp.gt.s32.totalorder %v694, 0
    %v795 = vsel %vm794, 1, 0
    %796 = vset.pattern.permute.xlu0 0
    %797 = vperm.xlu0 %796, %v795
    %v798 = vpop.permute.xlu0 %797
    %vm799 = vcmp.eq.s32.totalorder %v798, 1
    %v800 = vsel %vm799, %v793, 0.0
    %v801 = vsel %vm799, %v787, 0.0
    %v803 = vlaneseq
    %v804 = vshrl.u32 %v803, 7
    %v805 = vsub.s32 0, %v804
    %v806 = vrot.slane %v692, %v805
    %807 = vrot.lane.b32.xlu0 %v806, 64
    %v808 = vpop.permute.xlu0 %807
    %v810 = vmul.f32 %v800, %v808
    %812 = vrot.lane.b32.xlu0 %v810, 64
    %v813 = vpop.permute.xlu0 %812
    %v815 = vsel %vm74, %v813, 0.0
    %816 = vadd.xlane.f32.xlu0 %v815
    %v817 = vpop.xlane.xlu0 %816
    %v819 = vlaneseq
    %v820 = vshrl.u32 %v819, 7
    %v821 = vsub.s32 0, %v820
    %v822 = vrot.slane %v693, %v821
    %v824 = vadd.f32 %v817, %v822
    %v825 = vmax.f32 %v824, -1e+30
    %v826 = vsub.f32 -1e+30, %v825
    %v827 = vmul.f32 %v826, 1.442695
    %v828 = vpow.pop %v827
    %v829 = vsub.f32 %v824, %v825
    %v830 = vmul.f32 %v829, 1.442695
    %v831 = vpow.pop %v830
    %v832 = vmul.f32 %v828, 0.0
    %v833 = vadd.f32 %v832, %v831
    %835 = vset.pattern.permute.xlu0 0
    %836 = vperm.xlu0 %835, %v828
    %v837 = vpop.permute.xlu0 %836
    %v839 = vmul.f32 %v837, 0.0
    %841 = vset.pattern.permute.xlu0 0
    %842 = vperm.xlu0 %841, %v831
    %v843 = vpop.permute.xlu0 %842
    %v845 = vmul.f32 %v843, %v800
    %v846 = vadd.f32 %v839, %v845
    %v847 = vld [vmem:[%s224] sm:$0xff]
    %849 = vrot.lane.b32.xlu0 %v800, 64
    %v850 = vpop.permute.xlu0 %849
    %v851 = vsel %vm74, %v850, 0
    %853 = vmatprep.subr.mxu0 0.0
    %854 = vmatpush1.msra.mxu0 0.0
    %855 = vmatprep.subr.mxu0 0.0
    %856 = vmatpush1.msra.mxu0 0.0
    %857 = vmatprep.subr.mxu0 0.0
    %858 = vmatpush1.msra.mxu0 0.0
    %859 = vmatprep.subr.mxu0 0.0
    %860 = vmatpush1.msra.mxu0 0.0
    %861 = vmatprep.subr.mxu0 0.0
    %862 = vmatpush1.msra.mxu0 0.0
    %863 = vmatprep.subr.mxu0 0.0
    %864 = vmatpush1.msra.mxu0 0.0
    %865 = vmatprep.subr.mxu0 0.0
    %866 = vmatpush1.msra.mxu0 0.0
    %867 = vmatprep.subr.mxu0 0.0
    %868 = vmatpush1.msra.mxu0 0.0
    %869 = vmatprep.subr.mxu0 0.0
    %870 = vmatpush1.msra.mxu0 0.0
    %871 = vmatprep.subr.mxu0 0.0
    %872 = vmatpush1.msra.mxu0 0.0
    %873 = vmatprep.subr.mxu0 0.0
    %874 = vmatpush1.msra.mxu0 0.0
    %875 = vmatprep.subr.mxu0 0.0
    %876 = vmatpush1.msra.mxu0 0.0
    %877 = vmatprep.subr.mxu0 0.0
    %878 = vmatpush1.msra.mxu0 %v691
    %879 = vmatprep.subr.mxu0 0.0
    %880 = vmatpush1.msra.mxu0 %v690
    %881 = vmatprep.subr.mxu0 0.0
    %882 = vmatpush1.msra.mxu0 %v689
    %883 = vmatprep.subr.mxu0 0.0
    %884 = vmatpush1.msra.mxu0 %v688
    %885 = vmatprep.subr.mxu0 0.0
    %886 = vmatpush2.msra.mxu0 0.0
    %887 = vmatprep.subr.mxu0 0.0
    %888 = vmatpush2.msra.mxu0 0.0
    %889 = vmatprep.subr.mxu0 0.0
    %890 = vmatpush2.msra.mxu0 0.0
    %891 = vmatprep.subr.mxu0 0.0
    %892 = vmatpush2.msra.mxu0 0.0
    %893 = vmatprep.subr.mxu0 0.0
    %894 = vmatpush2.msra.mxu0 0.0
    %895 = vmatprep.subr.mxu0 0.0
    %896 = vmatpush2.msra.mxu0 0.0
    %897 = vmatprep.subr.mxu0 0.0
    %898 = vmatpush2.msra.mxu0 0.0
    %899 = vmatprep.subr.mxu0 0.0
    %900 = vmatpush2.msra.mxu0 0.0
    %901 = vmatprep.subr.mxu0 0.0
    %902 = vmatpush2.msra.mxu0 0.0
    %903 = vmatprep.subr.mxu0 0.0
    %904 = vmatpush2.msra.mxu0 0.0
    %905 = vmatprep.subr.mxu0 0.0
    %906 = vmatpush2.msra.mxu0 0.0
    %907 = vmatprep.subr.mxu0 0.0
    %908 = vmatpush2.msra.mxu0 0.0
    %909 = vmatprep.subr.mxu0 0.0
    %910 = vmatpush2.msra.mxu0 0.0
    %911 = vmatprep.subr.mxu0 0.0
    %912 = vmatpush2.msra.mxu0 0.0
    %913 = vmatprep.subr.mxu0 0.0
    %914 = vmatpush2.msra.mxu0 0.0
    %915 = vmatprep.subr.mxu0 0.0
    %916 = vmatpush2.msra.mxu0 0.0
    %917 = vmatprep.mubr.f32.mxu0 0.0
    %918 = vmatmul.mubr.f32.gmra.mxu0 %v851
    %v919 = vpop.f32.mrf.mxu0
    %v920 = vadd.f32 0.0, %v919
    %v921 = vpop.f32.mrf.mxu0
    %922 = vdwg.mxu0
    %v923 = vadd.f32 %v847, %v920
    %v924 = vxor.u32 %v923, 2147483648
    %v925 = vmul.f32 %v924, 1.442695
    %v926 = vpow.pop %v925
    %v927 = vadd.f32 %v926, 1.0
    %v928 = vrcp.pop %v927
    %v929 = vmul.f32 1.0, %v928
    %v930 = vtanh.pop %v923
    %v931 = vmul.f32 %v929, %v801
    %933 = vrot.lane.b32.xlu0 %v930, 32
    %v934 = vpop.permute.xlu0 %933
    %v936 = vmul.f32 %v929, %v934
    %938 = vrot.lane.b32.xlu0 %v936, 32
    %v939 = vpop.permute.xlu0 %938
    %v941 = vadd.f32 %v931, %v939
    %v942 = vtanh.pop %v941
    %944 = vrot.lane.b32.xlu0 %v942, 32
    %v945 = vpop.permute.xlu0 %944
    %v947 = vmul.f32 %v929, %v945
    %vm948 = vcmp.gt.s32.totalorder %v694, 1
    %v949 = vsel %vm948, 1, 0
    %950 = vset.pattern.permute.xlu0 0
    %951 = vperm.xlu0 %950, %v949
    %v952 = vpop.permute.xlu0 %951
    %vm953 = vcmp.eq.s32.totalorder %v952, 1
    %v954 = vsel %vm953, %v947, %v800
    %v955 = vsel %vm953, %v941, %v801
    %v956 = vsel %vm953, %v947, 0.0
    %v957 = vmul.f32 %v956, %v808
    %959 = vrot.lane.b32.xlu0 %v957, 64
    %v960 = vpop.permute.xlu0 %959
    %v962 = vsel %vm74, %v960, 0.0
    %963 = vadd.xlane.f32.xlu0 %v962
    %v964 = vpop.xlane.xlu0 %963
    %v965 = vadd.f32 %v964, %v822
    %v966 = vmax.f32 %v825, %v965
    %v967 = vsub.f32 %v825, %v966
    %v968 = vmul.f32 %v967, 1.442695
    %v969 = vpow.pop %v968
    %v970 = vsub.f32 %v965, %v966
    %v971 = vmul.f32 %v970, 1.442695
    %v972 = vpow.pop %v971
    %v973 = vmul.f32 %v969, %v833
    %v974 = vadd.f32 %v973, %v972
    %976 = vset.pattern.permute.xlu0 0
    %977 = vperm.xlu0 %976, %v969
    %v978 = vpop.permute.xlu0 %977
    %v980 = vmul.f32 %v978, %v846
    %982 = vset.pattern.permute.xlu0 0
    %983 = vperm.xlu0 %982, %v972
    %v984 = vpop.permute.xlu0 %983
    %v986 = vmul.f32 %v984, %v956
    %v987 = vadd.f32 %v980, %v986
    %v988 = vld [vmem:[%s301] sm:$0xff]
    %990 = vrot.lane.b32.xlu0 %v954, 64
    %v991 = vpop.permute.xlu0 %990
    %v992 = vsel %vm74, %v991, 0
    %994 = vmatprep.subr.mxu0 0.0
    %995 = vmatpush1.msra.mxu0 0.0
    %996 = vmatprep.subr.mxu0 0.0
    %997 = vmatpush1.msra.mxu0 0.0
    %998 = vmatprep.subr.mxu0 0.0
    %999 = vmatpush1.msra.mxu0 0.0
    %1000 = vmatprep.subr.mxu0 0.0
    %1001 = vmatpush1.msra.mxu0 0.0
    %1002 = vmatprep.subr.mxu0 0.0
    %1003 = vmatpush1.msra.mxu0 0.0
    %1004 = vmatprep.subr.mxu0 0.0
    %1005 = vmatpush1.msra.mxu0 0.0
    %1006 = vmatprep.subr.mxu0 0.0
    %1007 = vmatpush1.msra.mxu0 0.0
    %1008 = vmatprep.subr.mxu0 0.0
    %1009 = vmatpush1.msra.mxu0 0.0
    %1010 = vmatprep.subr.mxu0 0.0
    %1011 = vmatpush1.msra.mxu0 0.0
    %1012 = vmatprep.subr.mxu0 0.0
    %1013 = vmatpush1.msra.mxu0 0.0
    %1014 = vmatprep.subr.mxu0 0.0
    %1015 = vmatpush1.msra.mxu0 0.0
    %1016 = vmatprep.subr.mxu0 0.0
    %1017 = vmatpush1.msra.mxu0 0.0
    %1018 = vmatprep.subr.mxu0 0.0
    %1019 = vmatpush1.msra.mxu0 %v691
    %1020 = vmatprep.subr.mxu0 0.0
    %1021 = vmatpush1.msra.mxu0 %v690
    %1022 = vmatprep.subr.mxu0 0.0
    %1023 = vmatpush1.msra.mxu0 %v689
    %1024 = vmatprep.subr.mxu0 0.0
    %1025 = vmatpush1.msra.mxu0 %v688
    %1026 = vmatprep.subr.mxu0 0.0
    %1027 = vmatpush2.msra.mxu0 0.0
    %1028 = vmatprep.subr.mxu0 0.0
    %1029 = vmatpush2.msra.mxu0 0.0
    %1030 = vmatprep.subr.mxu0 0.0
    %1031 = vmatpush2.msra.mxu0 0.0
    %1032 = vmatprep.subr.mxu0 0.0
    %1033 = vmatpush2.msra.mxu0 0.0
    %1034 = vmatprep.subr.mxu0 0.0
    %1035 = vmatpush2.msra.mxu0 0.0
    %1036 = vmatprep.subr.mxu0 0.0
    %1037 = vmatpush2.msra.mxu0 0.0
    %1038 = vmatprep.subr.mxu0 0.0
    %1039 = vmatpush2.msra.mxu0 0.0
    %1040 = vmatprep.subr.mxu0 0.0
    %1041 = vmatpush2.msra.mxu0 0.0
    %1042 = vmatprep.subr.mxu0 0.0
    %1043 = vmatpush2.msra.mxu0 0.0
    %1044 = vmatprep.subr.mxu0 0.0
    %1045 = vmatpush2.msra.mxu0 0.0
    %1046 = vmatprep.subr.mxu0 0.0
    %1047 = vmatpush2.msra.mxu0 0.0
    %1048 = vmatprep.subr.mxu0 0.0
    %1049 = vmatpush2.msra.mxu0 0.0
    %1050 = vmatprep.subr.mxu0 0.0
    %1051 = vmatpush2.msra.mxu0 0.0
    %1052 = vmatprep.subr.mxu0 0.0
    %1053 = vmatpush2.msra.mxu0 0.0
    %1054 = vmatprep.subr.mxu0 0.0
    %1055 = vmatpush2.msra.mxu0 0.0
    %1056 = vmatprep.subr.mxu0 0.0
    %1057 = vmatpush2.msra.mxu0 0.0
    %1058 = vmatprep.mubr.f32.mxu0 0.0
    %1059 = vmatmul.mubr.f32.gmra.mxu0 %v992
    %v1060 = vpop.f32.mrf.mxu0
    %v1061 = vadd.f32 0.0, %v1060
    %v1062 = vpop.f32.mrf.mxu0
    %1063 = vdwg.mxu0
    %v1064 = vadd.f32 %v988, %v1061
    %v1065 = vxor.u32 %v1064, 2147483648
    %v1066 = vmul.f32 %v1065, 1.442695
    %v1067 = vpow.pop %v1066
    %v1068 = vadd.f32 %v1067, 1.0
    %v1069 = vrcp.pop %v1068
    %v1070 = vmul.f32 1.0, %v1069
    %v1071 = vtanh.pop %v1064
    %v1072 = vmul.f32 %v1070, %v955
    %1074 = vrot.lane.b32.xlu0 %v1071, 32
    %v1075 = vpop.permute.xlu0 %1074
    %v1077 = vmul.f32 %v1070, %v1075
    %1079 = vrot.lane.b32.xlu0 %v1077, 32
    %v1080 = vpop.permute.xlu0 %1079
    %v1082 = vadd.f32 %v1072, %v1080
    %v1083 = vtanh.pop %v1082
    %1085 = vrot.lane.b32.xlu0 %v1083, 32
    %v1086 = vpop.permute.xlu0 %1085
    %v1088 = vmul.f32 %v1070, %v1086
    %vm1089 = vcmp.gt.s32.totalorder %v694, 2
    %v1090 = vsel %vm1089, 1, 0
    %1091 = vset.pattern.permute.xlu0 0
    %1092 = vperm.xlu0 %1091, %v1090
    %v1093 = vpop.permute.xlu0 %1092
    %vm1094 = vcmp.eq.s32.totalorder %v1093, 1
    %v1095 = vsel %vm1094, %v1088, %v954
    %v1096 = vsel %vm1094, %v1082, %v955
    %v1097 = vsel %vm1094, %v1088, 0.0
    %v1098 = vmul.f32 %v1097, %v808
    %1100 = vrot.lane.b32.xlu0 %v1098, 64
    %v1101 = vpop.permute.xlu0 %1100
    %v1103 = vsel %vm74, %v1101, 0.0
    %1104 = vadd.xlane.f32.xlu0 %v1103
    %v1105 = vpop.xlane.xlu0 %1104
    %v1106 = vadd.f32 %v1105, %v822
    %v1107 = vmax.f32 %v966, %v1106
    %v1108 = vsub.f32 %v966, %v1107
    %v1109 = vmul.f32 %v1108, 1.442695
    %v1110 = vpow.pop %v1109
    %v1111 = vsub.f32 %v1106, %v1107
    %v1112 = vmul.f32 %v1111, 1.442695
    %v1113 = vpow.pop %v1112
    %v1114 = vmul.f32 %v1110, %v974
    %v1115 = vadd.f32 %v1114, %v1113
    %1117 = vset.pattern.permute.xlu0 0
    %1118 = vperm.xlu0 %1117, %v1110
    %v1119 = vpop.permute.xlu0 %1118
    %v1121 = vmul.f32 %v1119, %v987
    %1123 = vset.pattern.permute.xlu0 0
    %1124 = vperm.xlu0 %1123, %v1113
    %v1125 = vpop.permute.xlu0 %1124
    %v1127 = vmul.f32 %v1125, %v1097
    %v1128 = vadd.f32 %v1121, %v1127
    %v1129 = vld [vmem:[%s378] sm:$0xff]
    %1131 = vrot.lane.b32.xlu0 %v1095, 64
    %v1132 = vpop.permute.xlu0 %1131
    %v1133 = vsel %vm74, %v1132, 0
    %1135 = vmatprep.subr.mxu0 0.0
    %1136 = vmatpush1.msra.mxu0 0.0
    %1137 = vmatprep.subr.mxu0 0.0
    %1138 = vmatpush1.msra.mxu0 0.0
    %1139 = vmatprep.subr.mxu0 0.0
    %1140 = vmatpush1.msra.mxu0 0.0
    %1141 = vmatprep.subr.mxu0 0.0
    %1142 = vmatpush1.msra.mxu0 0.0
    %1143 = vmatprep.subr.mxu0 0.0
    %1144 = vmatpush1.msra.mxu0 0.0
    %1145 = vmatprep.subr.mxu0 0.0
    %1146 = vmatpush1.msra.mxu0 0.0
    %1147 = vmatprep.subr.mxu0 0.0
    %1148 = vmatpush1.msra.mxu0 0.0
    %1149 = vmatprep.subr.mxu0 0.0
    %1150 = vmatpush1.msra.mxu0 0.0
    %1151 = vmatprep.subr.mxu0 0.0
    %1152 = vmatpush1.msra.mxu0 0.0
    %1153 = vmatprep.subr.mxu0 0.0
    %1154 = vmatpush1.msra.mxu0 0.0
    %1155 = vmatprep.subr.mxu0 0.0
    %1156 = vmatpush1.msra.mxu0 0.0
    %1157 = vmatprep.subr.mxu0 0.0
    %1158 = vmatpush1.msra.mxu0 0.0
    %1159 = vmatprep.subr.mxu0 0.0
    %1160 = vmatpush1.msra.mxu0 %v691
    %1161 = vmatprep.subr.mxu0 0.0
    %1162 = vmatpush1.msra.mxu0 %v690
    %1163 = vmatprep.subr.mxu0 0.0
    %1164 = vmatpush1.msra.mxu0 %v689
    %1165 = vmatprep.subr.mxu0 0.0
    %1166 = vmatpush1.msra.mxu0 %v688
    %1167 = vmatprep.subr.mxu0 0.0
    %1168 = vmatpush2.msra.mxu0 0.0
    %1169 = vmatprep.subr.mxu0 0.0
    %1170 = vmatpush2.msra.mxu0 0.0
    %1171 = vmatprep.subr.mxu0 0.0
    %1172 = vmatpush2.msra.mxu0 0.0
    %1173 = vmatprep.subr.mxu0 0.0
    %1174 = vmatpush2.msra.mxu0 0.0
    %1175 = vmatprep.subr.mxu0 0.0
    %1176 = vmatpush2.msra.mxu0 0.0
    %1177 = vmatprep.subr.mxu0 0.0
    %1178 = vmatpush2.msra.mxu0 0.0
    %1179 = vmatprep.subr.mxu0 0.0
    %1180 = vmatpush2.msra.mxu0 0.0
    %1181 = vmatprep.subr.mxu0 0.0
    %1182 = vmatpush2.msra.mxu0 0.0
    %1183 = vmatprep.subr.mxu0 0.0
    %1184 = vmatpush2.msra.mxu0 0.0
    %1185 = vmatprep.subr.mxu0 0.0
    %1186 = vmatpush2.msra.mxu0 0.0
    %1187 = vmatprep.subr.mxu0 0.0
    %1188 = vmatpush2.msra.mxu0 0.0
    %1189 = vmatprep.subr.mxu0 0.0
    %1190 = vmatpush2.msra.mxu0 0.0
    %1191 = vmatprep.subr.mxu0 0.0
    %1192 = vmatpush2.msra.mxu0 0.0
    %1193 = vmatprep.subr.mxu0 0.0
    %1194 = vmatpush2.msra.mxu0 0.0
    %1195 = vmatprep.subr.mxu0 0.0
    %1196 = vmatpush2.msra.mxu0 0.0
    %1197 = vmatprep.subr.mxu0 0.0
    %1198 = vmatpush2.msra.mxu0 0.0
    %1199 = vmatprep.mubr.f32.mxu0 0.0
    %1200 = vmatmul.mubr.f32.gmra.mxu0 %v1133
    %v1201 = vpop.f32.mrf.mxu0
    %v1202 = vadd.f32 0.0, %v1201
    %v1203 = vpop.f32.mrf.mxu0
    %1204 = vdwg.mxu0
    %v1205 = vadd.f32 %v1129, %v1202
    %v1206 = vxor.u32 %v1205, 2147483648
    %v1207 = vmul.f32 %v1206, 1.442695
    %v1208 = vpow.pop %v1207
    %v1209 = vadd.f32 %v1208, 1.0
    %v1210 = vrcp.pop %v1209
    %v1211 = vmul.f32 1.0, %v1210
    %v1212 = vtanh.pop %v1205
    %v1213 = vmul.f32 %v1211, %v1096
    %1215 = vrot.lane.b32.xlu0 %v1212, 32
    %v1216 = vpop.permute.xlu0 %1215
    %v1218 = vmul.f32 %v1211, %v1216
    %1220 = vrot.lane.b32.xlu0 %v1218, 32
    %v1221 = vpop.permute.xlu0 %1220
    %v1223 = vadd.f32 %v1213, %v1221
    %v1224 = vtanh.pop %v1223
    %1226 = vrot.lane.b32.xlu0 %v1224, 32
    %v1227 = vpop.permute.xlu0 %1226
    %v1229 = vmul.f32 %v1211, %v1227
    %vm1230 = vcmp.gt.s32.totalorder %v694, 3
    %v1231 = vsel %vm1230, 1, 0
    %1232 = vset.pattern.permute.xlu0 0
    %1233 = vperm.xlu0 %1232, %v1231
    %v1234 = vpop.permute.xlu0 %1233
    %vm1235 = vcmp.eq.s32.totalorder %v1234, 1
    %v1236 = vsel %vm1235, %v1229, %v1095
    %v1237 = vsel %vm1235, %v1223, %v1096
    %v1238 = vsel %vm1235, %v1229, 0.0
    %v1239 = vmul.f32 %v1238, %v808
    %1241 = vrot.lane.b32.xlu0 %v1239, 64
    %v1242 = vpop.permute.xlu0 %1241
    %v1244 = vsel %vm74, %v1242, 0.0
    %1245 = vadd.xlane.f32.xlu0 %v1244
    %v1246 = vpop.xlane.xlu0 %1245
    %v1247 = vadd.f32 %v1246, %v822
    %v1248 = vmax.f32 %v1107, %v1247
    %v1249 = vsub.f32 %v1107, %v1248
    %v1250 = vmul.f32 %v1249, 1.442695
    %v1251 = vpow.pop %v1250
    %v1252 = vsub.f32 %v1247, %v1248
    %v1253 = vmul.f32 %v1252, 1.442695
    %v1254 = vpow.pop %v1253
    %v1255 = vmul.f32 %v1251, %v1115
    %v1256 = vadd.f32 %v1255, %v1254
    %1258 = vset.pattern.permute.xlu0 0
    %1259 = vperm.xlu0 %1258, %v1251
    %v1260 = vpop.permute.xlu0 %1259
    %v1262 = vmul.f32 %v1260, %v1128
    %1264 = vset.pattern.permute.xlu0 0
    %1265 = vperm.xlu0 %1264, %v1254
    %v1266 = vpop.permute.xlu0 %1265
    %v1268 = vmul.f32 %v1266, %v1238
    %v1269 = vadd.f32 %v1262, %v1268
    %v1270 = vld [vmem:[%s455] sm:$0xff]
    %1272 = vrot.lane.b32.xlu0 %v1236, 64
    %v1273 = vpop.permute.xlu0 %1272
    %v1274 = vsel %vm74, %v1273, 0
    %1276 = vmatprep.subr.mxu0 0.0
    %1277 = vmatpush1.msra.mxu0 0.0
    %1278 = vmatprep.subr.mxu0 0.0
    %1279 = vmatpush1.msra.mxu0 0.0
    %1280 = vmatprep.subr.mxu0 0.0
    %1281 = vmatpush1.msra.mxu0 0.0
    %1282 = vmatprep.subr.mxu0 0.0
    %1283 = vmatpush1.msra.mxu0 0.0
    %1284 = vmatprep.subr.mxu0 0.0
    %1285 = vmatpush1.msra.mxu0 0.0
    %1286 = vmatprep.subr.mxu0 0.0
    %1287 = vmatpush1.msra.mxu0 0.0
    %1288 = vmatprep.subr.mxu0 0.0
    %1289 = vmatpush1.msra.mxu0 0.0
    %1290 = vmatprep.subr.mxu0 0.0
    %1291 = vmatpush1.msra.mxu0 0.0
    %1292 = vmatprep.subr.mxu0 0.0
    %1293 = vmatpush1.msra.mxu0 0.0
    %1294 = vmatprep.subr.mxu0 0.0
    %1295 = vmatpush1.msra.mxu0 0.0
    %1296 = vmatprep.subr.mxu0 0.0
    %1297 = vmatpush1.msra.mxu0 0.0
    %1298 = vmatprep.subr.mxu0 0.0
    %1299 = vmatpush1.msra.mxu0 0.0
    %1300 = vmatprep.subr.mxu0 0.0
    %1301 = vmatpush1.msra.mxu0 %v691
    %1302 = vmatprep.subr.mxu0 0.0
    %1303 = vmatpush1.msra.mxu0 %v690
    %1304 = vmatprep.subr.mxu0 0.0
    %1305 = vmatpush1.msra.mxu0 %v689
    %1306 = vmatprep.subr.mxu0 0.0
    %1307 = vmatpush1.msra.mxu0 %v688
    %1308 = vmatprep.subr.mxu0 0.0
    %1309 = vmatpush2.msra.mxu0 0.0
    %1310 = vmatprep.subr.mxu0 0.0
    %1311 = vmatpush2.msra.mxu0 0.0
    %1312 = vmatprep.subr.mxu0 0.0
    %1313 = vmatpush2.msra.mxu0 0.0
    %1314 = vmatprep.subr.mxu0 0.0
    %1315 = vmatpush2.msra.mxu0 0.0
    %1316 = vmatprep.subr.mxu0 0.0
    %1317 = vmatpush2.msra.mxu0 0.0
    %1318 = vmatprep.subr.mxu0 0.0
    %1319 = vmatpush2.msra.mxu0 0.0
    %1320 = vmatprep.subr.mxu0 0.0
    %1321 = vmatpush2.msra.mxu0 0.0
    %1322 = vmatprep.subr.mxu0 0.0
    %1323 = vmatpush2.msra.mxu0 0.0
    %1324 = vmatprep.subr.mxu0 0.0
    %1325 = vmatpush2.msra.mxu0 0.0
    %1326 = vmatprep.subr.mxu0 0.0
    %1327 = vmatpush2.msra.mxu0 0.0
    %1328 = vmatprep.subr.mxu0 0.0
    %1329 = vmatpush2.msra.mxu0 0.0
    %1330 = vmatprep.subr.mxu0 0.0
    %1331 = vmatpush2.msra.mxu0 0.0
    %1332 = vmatprep.subr.mxu0 0.0
    %1333 = vmatpush2.msra.mxu0 0.0
    %1334 = vmatprep.subr.mxu0 0.0
    %1335 = vmatpush2.msra.mxu0 0.0
    %1336 = vmatprep.subr.mxu0 0.0
    %1337 = vmatpush2.msra.mxu0 0.0
    %1338 = vmatprep.subr.mxu0 0.0
    %1339 = vmatpush2.msra.mxu0 0.0
    %1340 = vmatprep.mubr.f32.mxu0 0.0
    %1341 = vmatmul.mubr.f32.gmra.mxu0 %v1274
    %v1342 = vpop.f32.mrf.mxu0
    %v1343 = vadd.f32 0.0, %v1342
    %v1344 = vpop.f32.mrf.mxu0
    %1345 = vdwg.mxu0
    %v1346 = vadd.f32 %v1270, %v1343
    %v1347 = vxor.u32 %v1346, 2147483648
    %v1348 = vmul.f32 %v1347, 1.442695
    %v1349 = vpow.pop %v1348
    %v1350 = vadd.f32 %v1349, 1.0
    %v1351 = vrcp.pop %v1350
    %v1352 = vmul.f32 1.0, %v1351
    %v1353 = vtanh.pop %v1346
    %v1354 = vmul.f32 %v1352, %v1237
    %1356 = vrot.lane.b32.xlu0 %v1353, 32
    %v1357 = vpop.permute.xlu0 %1356
    %v1359 = vmul.f32 %v1352, %v1357
    %1361 = vrot.lane.b32.xlu0 %v1359, 32
    %v1362 = vpop.permute.xlu0 %1361
    %v1364 = vadd.f32 %v1354, %v1362
    %v1365 = vtanh.pop %v1364
    %1367 = vrot.lane.b32.xlu0 %v1365, 32
    %v1368 = vpop.permute.xlu0 %1367
    %v1370 = vmul.f32 %v1352, %v1368
    %vm1371 = vcmp.gt.s32.totalorder %v694, 4
    %v1372 = vsel %vm1371, 1, 0
    %1373 = vset.pattern.permute.xlu0 0
    %1374 = vperm.xlu0 %1373, %v1372
    %v1375 = vpop.permute.xlu0 %1374
    %vm1376 = vcmp.eq.s32.totalorder %v1375, 1
    %v1377 = vsel %vm1376, %v1370, %v1236
    %v1378 = vsel %vm1376, %v1364, %v1237
    %v1379 = vsel %vm1376, %v1370, 0.0
    %v1380 = vmul.f32 %v1379, %v808
    %1382 = vrot.lane.b32.xlu0 %v1380, 64
    %v1383 = vpop.permute.xlu0 %1382
    %v1385 = vsel %vm74, %v1383, 0.0
    %1386 = vadd.xlane.f32.xlu0 %v1385
    %v1387 = vpop.xlane.xlu0 %1386
    %v1388 = vadd.f32 %v1387, %v822
    %v1389 = vmax.f32 %v1248, %v1388
    %v1390 = vsub.f32 %v1248, %v1389
    %v1391 = vmul.f32 %v1390, 1.442695
    %v1392 = vpow.pop %v1391
    %v1393 = vsub.f32 %v1388, %v1389
    %v1394 = vmul.f32 %v1393, 1.442695
    %v1395 = vpow.pop %v1394
    %v1396 = vmul.f32 %v1392, %v1256
    %v1397 = vadd.f32 %v1396, %v1395
    %1399 = vset.pattern.permute.xlu0 0
    %1400 = vperm.xlu0 %1399, %v1392
    %v1401 = vpop.permute.xlu0 %1400
    %v1403 = vmul.f32 %v1401, %v1269
    %1405 = vset.pattern.permute.xlu0 0
    %1406 = vperm.xlu0 %1405, %v1395
    %v1407 = vpop.permute.xlu0 %1406
    %v1409 = vmul.f32 %v1407, %v1379
    %v1410 = vadd.f32 %v1403, %v1409
    %v1411 = vld [vmem:[%s532] sm:$0xff]
    %1413 = vrot.lane.b32.xlu0 %v1377, 64
    %v1414 = vpop.permute.xlu0 %1413
    %v1415 = vsel %vm74, %v1414, 0
    %1417 = vmatprep.subr.mxu0 0.0
    %1418 = vmatpush1.msra.mxu0 0.0
    %1419 = vmatprep.subr.mxu0 0.0
    %1420 = vmatpush1.msra.mxu0 0.0
    %1421 = vmatprep.subr.mxu0 0.0
    %1422 = vmatpush1.msra.mxu0 0.0
    %1423 = vmatprep.subr.mxu0 0.0
    %1424 = vmatpush1.msra.mxu0 0.0
    %1425 = vmatprep.subr.mxu0 0.0
    %1426 = vmatpush1.msra.mxu0 0.0
    %1427 = vmatprep.subr.mxu0 0.0
    %1428 = vmatpush1.msra.mxu0 0.0
    %1429 = vmatprep.subr.mxu0 0.0
    %1430 = vmatpush1.msra.mxu0 0.0
    %1431 = vmatprep.subr.mxu0 0.0
    %1432 = vmatpush1.msra.mxu0 0.0
    %1433 = vmatprep.subr.mxu0 0.0
    %1434 = vmatpush1.msra.mxu0 0.0
    %1435 = vmatprep.subr.mxu0 0.0
    %1436 = vmatpush1.msra.mxu0 0.0
    %1437 = vmatprep.subr.mxu0 0.0
    %1438 = vmatpush1.msra.mxu0 0.0
    %1439 = vmatprep.subr.mxu0 0.0
    %1440 = vmatpush1.msra.mxu0 0.0
    %1441 = vmatprep.subr.mxu0 0.0
    %1442 = vmatpush1.msra.mxu0 %v691
    %1443 = vmatprep.subr.mxu0 0.0
    %1444 = vmatpush1.msra.mxu0 %v690
    %1445 = vmatprep.subr.mxu0 0.0
    %1446 = vmatpush1.msra.mxu0 %v689
    %1447 = vmatprep.subr.mxu0 0.0
    %1448 = vmatpush1.msra.mxu0 %v688
    %1449 = vmatprep.subr.mxu0 0.0
    %1450 = vmatpush2.msra.mxu0 0.0
    %1451 = vmatprep.subr.mxu0 0.0
    %1452 = vmatpush2.msra.mxu0 0.0
    %1453 = vmatprep.subr.mxu0 0.0
    %1454 = vmatpush2.msra.mxu0 0.0
    %1455 = vmatprep.subr.mxu0 0.0
    %1456 = vmatpush2.msra.mxu0 0.0
    %1457 = vmatprep.subr.mxu0 0.0
    %1458 = vmatpush2.msra.mxu0 0.0
    %1459 = vmatprep.subr.mxu0 0.0
    %1460 = vmatpush2.msra.mxu0 0.0
    %1461 = vmatprep.subr.mxu0 0.0
    %1462 = vmatpush2.msra.mxu0 0.0
    %1463 = vmatprep.subr.mxu0 0.0
    %1464 = vmatpush2.msra.mxu0 0.0
    %1465 = vmatprep.subr.mxu0 0.0
    %1466 = vmatpush2.msra.mxu0 0.0
    %1467 = vmatprep.subr.mxu0 0.0
    %1468 = vmatpush2.msra.mxu0 0.0
    %1469 = vmatprep.subr.mxu0 0.0
    %1470 = vmatpush2.msra.mxu0 0.0
    %1471 = vmatprep.subr.mxu0 0.0
    %1472 = vmatpush2.msra.mxu0 0.0
    %1473 = vmatprep.subr.mxu0 0.0
    %1474 = vmatpush2.msra.mxu0 0.0
    %1475 = vmatprep.subr.mxu0 0.0
    %1476 = vmatpush2.msra.mxu0 0.0
    %1477 = vmatprep.subr.mxu0 0.0
    %1478 = vmatpush2.msra.mxu0 0.0
    %1479 = vmatprep.subr.mxu0 0.0
    %1480 = vmatpush2.msra.mxu0 0.0
    %1481 = vmatprep.mubr.f32.mxu0 0.0
    %1482 = vmatmul.mubr.f32.gmra.mxu0 %v1415
    %v1483 = vpop.f32.mrf.mxu0
    %v1484 = vadd.f32 0.0, %v1483
    %v1485 = vpop.f32.mrf.mxu0
    %1486 = vdwg.mxu0
    %v1487 = vadd.f32 %v1411, %v1484
    %v1488 = vxor.u32 %v1487, 2147483648
    %v1489 = vmul.f32 %v1488, 1.442695
    %v1490 = vpow.pop %v1489
    %v1491 = vadd.f32 %v1490, 1.0
    %v1492 = vrcp.pop %v1491
    %v1493 = vmul.f32 1.0, %v1492
    %v1494 = vtanh.pop %v1487
    %v1495 = vmul.f32 %v1493, %v1378
    %1497 = vrot.lane.b32.xlu0 %v1494, 32
    %v1498 = vpop.permute.xlu0 %1497
    %v1500 = vmul.f32 %v1493, %v1498
    %1502 = vrot.lane.b32.xlu0 %v1500, 32
    %v1503 = vpop.permute.xlu0 %1502
    %v1505 = vadd.f32 %v1495, %v1503
    %v1506 = vtanh.pop %v1505
    %1508 = vrot.lane.b32.xlu0 %v1506, 32
    %v1509 = vpop.permute.xlu0 %1508
    %v1511 = vmul.f32 %v1493, %v1509
    %vm1512 = vcmp.gt.s32.totalorder %v694, 5
    %v1513 = vsel %vm1512, 1, 0
    %1514 = vset.pattern.permute.xlu0 0
    %1515 = vperm.xlu0 %1514, %v1513
    %v1516 = vpop.permute.xlu0 %1515
    %vm1517 = vcmp.eq.s32.totalorder %v1516, 1
    %v1518 = vsel %vm1517, %v1511, %v1377
    %v1519 = vsel %vm1517, %v1505, %v1378
    %v1520 = vsel %vm1517, %v1511, 0.0
    %v1521 = vmul.f32 %v1520, %v808
    %1523 = vrot.lane.b32.xlu0 %v1521, 64
    %v1524 = vpop.permute.xlu0 %1523
    %v1526 = vsel %vm74, %v1524, 0.0
    %1527 = vadd.xlane.f32.xlu0 %v1526
    %v1528 = vpop.xlane.xlu0 %1527
    %v1529 = vadd.f32 %v1528, %v822
    %v1530 = vmax.f32 %v1389, %v1529
    %v1531 = vsub.f32 %v1389, %v1530
    %v1532 = vmul.f32 %v1531, 1.442695
    %v1533 = vpow.pop %v1532
    %v1534 = vsub.f32 %v1529, %v1530
    %v1535 = vmul.f32 %v1534, 1.442695
    %v1536 = vpow.pop %v1535
    %v1537 = vmul.f32 %v1533, %v1397
    %v1538 = vadd.f32 %v1537, %v1536
    %1540 = vset.pattern.permute.xlu0 0
    %1541 = vperm.xlu0 %1540, %v1533
    %v1542 = vpop.permute.xlu0 %1541
    %v1544 = vmul.f32 %v1542, %v1410
    %1546 = vset.pattern.permute.xlu0 0
    %1547 = vperm.xlu0 %1546, %v1536
    %v1548 = vpop.permute.xlu0 %1547
    %v1550 = vmul.f32 %v1548, %v1520
    %v1551 = vadd.f32 %v1544, %v1550
    %v1552 = vld [vmem:[%s609] sm:$0xff]
    %1554 = vrot.lane.b32.xlu0 %v1518, 64
    %v1555 = vpop.permute.xlu0 %1554
    %v1556 = vsel %vm74, %v1555, 0
    %1558 = vmatprep.subr.mxu0 0.0
    %1559 = vmatpush1.msra.mxu0 0.0
    %1560 = vmatprep.subr.mxu0 0.0
    %1561 = vmatpush1.msra.mxu0 0.0
    %1562 = vmatprep.subr.mxu0 0.0
    %1563 = vmatpush1.msra.mxu0 0.0
    %1564 = vmatprep.subr.mxu0 0.0
    %1565 = vmatpush1.msra.mxu0 0.0
    %1566 = vmatprep.subr.mxu0 0.0
    %1567 = vmatpush1.msra.mxu0 0.0
    %1568 = vmatprep.subr.mxu0 0.0
    %1569 = vmatpush1.msra.mxu0 0.0
    %1570 = vmatprep.subr.mxu0 0.0
    %1571 = vmatpush1.msra.mxu0 0.0
    %1572 = vmatprep.subr.mxu0 0.0
    %1573 = vmatpush1.msra.mxu0 0.0
    %1574 = vmatprep.subr.mxu0 0.0
    %1575 = vmatpush1.msra.mxu0 0.0
    %1576 = vmatprep.subr.mxu0 0.0
    %1577 = vmatpush1.msra.mxu0 0.0
    %1578 = vmatprep.subr.mxu0 0.0
    %1579 = vmatpush1.msra.mxu0 0.0
    %1580 = vmatprep.subr.mxu0 0.0
    %1581 = vmatpush1.msra.mxu0 0.0
    %1582 = vmatprep.subr.mxu0 0.0
    %1583 = vmatpush1.msra.mxu0 %v691
    %1584 = vmatprep.subr.mxu0 0.0
    %1585 = vmatpush1.msra.mxu0 %v690
    %1586 = vmatprep.subr.mxu0 0.0
    %1587 = vmatpush1.msra.mxu0 %v689
    %1588 = vmatprep.subr.mxu0 0.0
    %1589 = vmatpush1.msra.mxu0 %v688
    %1590 = vmatprep.subr.mxu0 0.0
    %1591 = vmatpush2.msra.mxu0 0.0
    %1592 = vmatprep.subr.mxu0 0.0
    %1593 = vmatpush2.msra.mxu0 0.0
    %1594 = vmatprep.subr.mxu0 0.0
    %1595 = vmatpush2.msra.mxu0 0.0
    %1596 = vmatprep.subr.mxu0 0.0
    %1597 = vmatpush2.msra.mxu0 0.0
    %1598 = vmatprep.subr.mxu0 0.0
    %1599 = vmatpush2.msra.mxu0 0.0
    %1600 = vmatprep.subr.mxu0 0.0
    %1601 = vmatpush2.msra.mxu0 0.0
    %1602 = vmatprep.subr.mxu0 0.0
    %1603 = vmatpush2.msra.mxu0 0.0
    %1604 = vmatprep.subr.mxu0 0.0
    %1605 = vmatpush2.msra.mxu0 0.0
    %1606 = vmatprep.subr.mxu0 0.0
    %1607 = vmatpush2.msra.mxu0 0.0
    %1608 = vmatprep.subr.mxu0 0.0
    %1609 = vmatpush2.msra.mxu0 0.0
    %1610 = vmatprep.subr.mxu0 0.0
    %1611 = vmatpush2.msra.mxu0 0.0
    %1612 = vmatprep.subr.mxu0 0.0
    %1613 = vmatpush2.msra.mxu0 0.0
    %1614 = vmatprep.subr.mxu0 0.0
    %1615 = vmatpush2.msra.mxu0 0.0
    %1616 = vmatprep.subr.mxu0 0.0
    %1617 = vmatpush2.msra.mxu0 0.0
    %1618 = vmatprep.subr.mxu0 0.0
    %1619 = vmatpush2.msra.mxu0 0.0
    %1620 = vmatprep.subr.mxu0 0.0
    %1621 = vmatpush2.msra.mxu0 0.0
    %1622 = vmatprep.mubr.f32.mxu0 0.0
    %1623 = vmatmul.mubr.f32.gmra.mxu0 %v1556
    %v1624 = vpop.f32.mrf.mxu0
    %v1625 = vadd.f32 0.0, %v1624
    %v1626 = vpop.f32.mrf.mxu0
    %1627 = vdwg.mxu0
    %v1628 = vadd.f32 %v1552, %v1625
    %v1629 = vxor.u32 %v1628, 2147483648
    %v1630 = vmul.f32 %v1629, 1.442695
    %v1631 = vpow.pop %v1630
    %v1632 = vadd.f32 %v1631, 1.0
    %v1633 = vrcp.pop %v1632
    %v1634 = vmul.f32 1.0, %v1633
    %v1635 = vtanh.pop %v1628
    %v1636 = vmul.f32 %v1634, %v1519
    %1638 = vrot.lane.b32.xlu0 %v1635, 32
    %v1639 = vpop.permute.xlu0 %1638
    %v1641 = vmul.f32 %v1634, %v1639
    %1643 = vrot.lane.b32.xlu0 %v1641, 32
    %v1644 = vpop.permute.xlu0 %1643
    %v1646 = vadd.f32 %v1636, %v1644
    %v1647 = vtanh.pop %v1646
    %1649 = vrot.lane.b32.xlu0 %v1647, 32
    %v1650 = vpop.permute.xlu0 %1649
    %v1652 = vmul.f32 %v1634, %v1650
    %vm1653 = vcmp.gt.s32.totalorder %v694, 6
    %v1654 = vsel %vm1653, 1, 0
    %1655 = vset.pattern.permute.xlu0 0
    %1656 = vperm.xlu0 %1655, %v1654
    %v1657 = vpop.permute.xlu0 %1656
    %vm1658 = vcmp.eq.s32.totalorder %v1657, 1
    %v1659 = vsel %vm1658, %v1652, %v1518
    %v1660 = vsel %vm1658, %v1646, %v1519
    %v1661 = vsel %vm1658, %v1652, 0.0
    %v1662 = vmul.f32 %v1661, %v808
    %1664 = vrot.lane.b32.xlu0 %v1662, 64
    %v1665 = vpop.permute.xlu0 %1664
    %v1667 = vsel %vm74, %v1665, 0.0
    %1668 = vadd.xlane.f32.xlu0 %v1667
    %v1669 = vpop.xlane.xlu0 %1668
    %v1670 = vadd.f32 %v1669, %v822
    %v1671 = vmax.f32 %v1530, %v1670
    %v1672 = vsub.f32 %v1530, %v1671
    %v1673 = vmul.f32 %v1672, 1.442695
    %v1674 = vpow.pop %v1673
    %v1675 = vsub.f32 %v1670, %v1671
    %v1676 = vmul.f32 %v1675, 1.442695
    %v1677 = vpow.pop %v1676
    %v1678 = vmul.f32 %v1674, %v1538
    %v1679 = vadd.f32 %v1678, %v1677
    %1681 = vset.pattern.permute.xlu0 0
    %1682 = vperm.xlu0 %1681, %v1674
    %v1683 = vpop.permute.xlu0 %1682
    %v1685 = vmul.f32 %v1683, %v1551
    %1687 = vset.pattern.permute.xlu0 0
    %1688 = vperm.xlu0 %1687, %v1677
    %v1689 = vpop.permute.xlu0 %1688
    %v1691 = vmul.f32 %v1689, %v1661
    %v1692 = vadd.f32 %v1685, %v1691
    %v1693 = vld [vmem:[%s686] sm:$0xff]
    %1695 = vrot.lane.b32.xlu0 %v1659, 64
    %v1696 = vpop.permute.xlu0 %1695
    %v1697 = vsel %vm74, %v1696, 0
    %1699 = vmatprep.subr.mxu0 0.0
    %1700 = vmatpush1.msra.mxu0 0.0
    %1701 = vmatprep.subr.mxu0 0.0
    %1702 = vmatpush1.msra.mxu0 0.0
    %1703 = vmatprep.subr.mxu0 0.0
    %1704 = vmatpush1.msra.mxu0 0.0
    %1705 = vmatprep.subr.mxu0 0.0
    %1706 = vmatpush1.msra.mxu0 0.0
    %1707 = vmatprep.subr.mxu0 0.0
    %1708 = vmatpush1.msra.mxu0 0.0
    %1709 = vmatprep.subr.mxu0 0.0
    %1710 = vmatpush1.msra.mxu0 0.0
    %1711 = vmatprep.subr.mxu0 0.0
    %1712 = vmatpush1.msra.mxu0 0.0
    %1713 = vmatprep.subr.mxu0 0.0
    %1714 = vmatpush1.msra.mxu0 0.0
    %1715 = vmatprep.subr.mxu0 0.0
    %1716 = vmatpush1.msra.mxu0 0.0
    %1717 = vmatprep.subr.mxu0 0.0
    %1718 = vmatpush1.msra.mxu0 0.0
    %1719 = vmatprep.subr.mxu0 0.0
    %1720 = vmatpush1.msra.mxu0 0.0
    %1721 = vmatprep.subr.mxu0 0.0
    %1722 = vmatpush1.msra.mxu0 0.0
    %1723 = vmatprep.subr.mxu0 0.0
    %1724 = vmatpush1.msra.mxu0 %v691
    %1725 = vmatprep.subr.mxu0 0.0
    %1726 = vmatpush1.msra.mxu0 %v690
    %1727 = vmatprep.subr.mxu0 0.0
    %1728 = vmatpush1.msra.mxu0 %v689
    %1729 = vmatprep.subr.mxu0 0.0
    %1730 = vmatpush1.msra.mxu0 %v688
    %1731 = vmatprep.subr.mxu0 0.0
    %1732 = vmatpush2.msra.mxu0 0.0
    %1733 = vmatprep.subr.mxu0 0.0
    %1734 = vmatpush2.msra.mxu0 0.0
    %1735 = vmatprep.subr.mxu0 0.0
    %1736 = vmatpush2.msra.mxu0 0.0
    %1737 = vmatprep.subr.mxu0 0.0
    %1738 = vmatpush2.msra.mxu0 0.0
    %1739 = vmatprep.subr.mxu0 0.0
    %1740 = vmatpush2.msra.mxu0 0.0
    %1741 = vmatprep.subr.mxu0 0.0
    %1742 = vmatpush2.msra.mxu0 0.0
    %1743 = vmatprep.subr.mxu0 0.0
    %1744 = vmatpush2.msra.mxu0 0.0
    %1745 = vmatprep.subr.mxu0 0.0
    %1746 = vmatpush2.msra.mxu0 0.0
    %1747 = vmatprep.subr.mxu0 0.0
    %1748 = vmatpush2.msra.mxu0 0.0
    %1749 = vmatprep.subr.mxu0 0.0
    %1750 = vmatpush2.msra.mxu0 0.0
    %1751 = vmatprep.subr.mxu0 0.0
    %1752 = vmatpush2.msra.mxu0 0.0
    %1753 = vmatprep.subr.mxu0 0.0
    %1754 = vmatpush2.msra.mxu0 0.0
    %1755 = vmatprep.subr.mxu0 0.0
    %1756 = vmatpush2.msra.mxu0 0.0
    %1757 = vmatprep.subr.mxu0 0.0
    %1758 = vmatpush2.msra.mxu0 0.0
    %1759 = vmatprep.subr.mxu0 0.0
    %1760 = vmatpush2.msra.mxu0 0.0
    %1761 = vmatprep.subr.mxu0 0.0
    %1762 = vmatpush2.msra.mxu0 0.0
    %1763 = vmatprep.mubr.f32.mxu0 0.0
    %1764 = vmatmul.mubr.f32.gmra.mxu0 %v1697
    %v1765 = vpop.f32.mrf.mxu0
    %v1766 = vadd.f32 0.0, %v1765
    %v1767 = vpop.f32.mrf.mxu0
    %1768 = vdwg.mxu0
    %v1769 = vadd.f32 %v1693, %v1766
    %v1770 = vxor.u32 %v1769, 2147483648
    %v1771 = vmul.f32 %v1770, 1.442695
    %v1772 = vpow.pop %v1771
    %v1773 = vadd.f32 %v1772, 1.0
    %v1774 = vrcp.pop %v1773
    %v1775 = vmul.f32 1.0, %v1774
    %v1776 = vtanh.pop %v1769
    %v1777 = vmul.f32 %v1775, %v1660
    %1779 = vrot.lane.b32.xlu0 %v1776, 32
    %v1780 = vpop.permute.xlu0 %1779
    %v1782 = vmul.f32 %v1775, %v1780
    %1784 = vrot.lane.b32.xlu0 %v1782, 32
    %v1785 = vpop.permute.xlu0 %1784
    %v1787 = vadd.f32 %v1777, %v1785
    %v1788 = vtanh.pop %v1787
    %1790 = vrot.lane.b32.xlu0 %v1788, 32
    %v1791 = vpop.permute.xlu0 %1790
    %v1793 = vmul.f32 %v1775, %v1791
    %vm1794 = vcmp.gt.s32.totalorder %v694, 7
    %v1795 = vsel %vm1794, 1, 0
    %1796 = vset.pattern.permute.xlu0 0
    %1797 = vperm.xlu0 %1796, %v1795
    %v1798 = vpop.permute.xlu0 %1797
    %vm1799 = vcmp.eq.s32.totalorder %v1798, 1
    %v1800 = vsel %vm1799, %v1793, 0.0
    %v1801 = vmul.f32 %v1800, %v808
    %1803 = vrot.lane.b32.xlu0 %v1801, 64
    %v1804 = vpop.permute.xlu0 %1803
    %v1806 = vsel %vm74, %v1804, 0.0
    %1807 = vadd.xlane.f32.xlu0 %v1806
    %v1808 = vpop.xlane.xlu0 %1807
    %v1809 = vadd.f32 %v1808, %v822
    %v1810 = vmax.f32 %v1671, %v1809
    %v1811 = vsub.f32 %v1671, %v1810
    %v1812 = vmul.f32 %v1811, 1.442695
    %v1813 = vpow.pop %v1812
    %v1814 = vsub.f32 %v1809, %v1810
    %v1815 = vmul.f32 %v1814, 1.442695
    %v1816 = vpow.pop %v1815
    %v1817 = vmul.f32 %v1813, %v1679
    %v1818 = vadd.f32 %v1817, %v1816
    %1820 = vset.pattern.permute.xlu0 0
    %1821 = vperm.xlu0 %1820, %v1813
    %v1822 = vpop.permute.xlu0 %1821
    %v1824 = vmul.f32 %v1822, %v1692
    %1826 = vset.pattern.permute.xlu0 0
    %1827 = vperm.xlu0 %1826, %v1816
    %v1828 = vpop.permute.xlu0 %1827
    %v1830 = vmul.f32 %v1828, %v1800
    %v1831 = vadd.f32 %v1824, %v1830
    %1833 = vset.pattern.permute.xlu0 0
    %1834 = vperm.xlu0 %1833, %v1818
    %v1835 = vpop.permute.xlu0 %1834
    %v1837 = vrcp.pop %v1835
    %v1838 = vmul.f32 %v1831, %v1837
    %v1839 = vld [vmem:[%s7] sm:$0xff]
    %v1840 = vld [vmem:[%s7 + $0x8] sm:$0xff]
    %v1841 = vld [vmem:[%s7 + $0x10] sm:$0xff]
    %v1842 = vld [vmem:[%s7 + $0x18] sm:$0xff]
    %v1843 = vld [vmem:[%s8] sm:$0x1]
    %v1845 = vlaneseq
    %v1846 = vshrl.u32 %v1845, 7
    %v1847 = vsub.s32 0, %v1846
    %v1848 = vrot.slane %v1843, %v1847
    %1851 = vrot.lane.b32.xlu0 %v1838, 64
    %v1852 = vpop.permute.xlu0 %1851
    %v1853 = vsel %vm74, %v1852, 0
    %1855 = vmatprep.subr.mxu0 0.0
    %1856 = vmatpush1.msra.mxu0 0.0
    %1857 = vmatprep.subr.mxu0 0.0
    %1858 = vmatpush1.msra.mxu0 0.0
    %1859 = vmatprep.subr.mxu0 0.0
    %1860 = vmatpush1.msra.mxu0 0.0
    %1861 = vmatprep.subr.mxu0 0.0
    %1862 = vmatpush1.msra.mxu0 0.0
    %1863 = vmatprep.subr.mxu0 0.0
    %1864 = vmatpush1.msra.mxu0 0.0
    %1865 = vmatprep.subr.mxu0 0.0
    %1866 = vmatpush1.msra.mxu0 0.0
    %1867 = vmatprep.subr.mxu0 0.0
    %1868 = vmatpush1.msra.mxu0 0.0
    %1869 = vmatprep.subr.mxu0 0.0
    %1870 = vmatpush1.msra.mxu0 0.0
    %1871 = vmatprep.subr.mxu0 0.0
    %1872 = vmatpush1.msra.mxu0 0.0
    %1873 = vmatprep.subr.mxu0 0.0
    %1874 = vmatpush1.msra.mxu0 0.0
    %1875 = vmatprep.subr.mxu0 0.0
    %1876 = vmatpush1.msra.mxu0 0.0
    %1877 = vmatprep.subr.mxu0 0.0
    %1878 = vmatpush1.msra.mxu0 0.0
    %1879 = vmatprep.subr.mxu0 0.0
    %1880 = vmatpush1.msra.mxu0 %v1842
    %1881 = vmatprep.subr.mxu0 0.0
    %1882 = vmatpush1.msra.mxu0 %v1841
    %1883 = vmatprep.subr.mxu0 0.0
    %1884 = vmatpush1.msra.mxu0 %v1840
    %1885 = vmatprep.subr.mxu0 0.0
    %1886 = vmatpush1.msra.mxu0 %v1839
    %1887 = vmatprep.subr.mxu0 0.0
    %1888 = vmatpush2.msra.mxu0 0.0
    %1889 = vmatprep.subr.mxu0 0.0
    %1890 = vmatpush2.msra.mxu0 0.0
    %1891 = vmatprep.subr.mxu0 0.0
    %1892 = vmatpush2.msra.mxu0 0.0
    %1893 = vmatprep.subr.mxu0 0.0
    %1894 = vmatpush2.msra.mxu0 0.0
    %1895 = vmatprep.subr.mxu0 0.0
    %1896 = vmatpush2.msra.mxu0 0.0
    %1897 = vmatprep.subr.mxu0 0.0
    %1898 = vmatpush2.msra.mxu0 0.0
    %1899 = vmatprep.subr.mxu0 0.0
    %1900 = vmatpush2.msra.mxu0 0.0
    %1901 = vmatprep.subr.mxu0 0.0
    %1902 = vmatpush2.msra.mxu0 0.0
    %1903 = vmatprep.subr.mxu0 0.0
    %1904 = vmatpush2.msra.mxu0 0.0
    %1905 = vmatprep.subr.mxu0 0.0
    %1906 = vmatpush2.msra.mxu0 0.0
    %1907 = vmatprep.subr.mxu0 0.0
    %1908 = vmatpush2.msra.mxu0 0.0
    %1909 = vmatprep.subr.mxu0 0.0
    %1910 = vmatpush2.msra.mxu0 0.0
    %1911 = vmatprep.subr.mxu0 0.0
    %1912 = vmatpush2.msra.mxu0 0.0
    %1913 = vmatprep.subr.mxu0 0.0
    %1914 = vmatpush2.msra.mxu0 0.0
    %1915 = vmatprep.subr.mxu0 0.0
    %1916 = vmatpush2.msra.mxu0 0.0
    %1917 = vmatprep.subr.mxu0 0.0
    %1918 = vmatpush2.msra.mxu0 0.0
    %1919 = vmatprep.mubr.f32.mxu0 0.0
    %1920 = vmatmul.mubr.f32.gmra.mxu0 %v1853
    %v1921 = vpop.f32.mrf.mxu0
    %v1922 = vadd.f32 %v1848, %v1921
    %v1923 = vpop.f32.mrf.mxu0
    %1924 = vdwg.mxu0
    %vm1925 = vcmask 31744
    %v1926 = vsel %vm1925, %v1922, -inf
    %1927 = vmax.xlane.f32.xlu0 %v1926
    %v1928 = vpop.xlane.xlu0 %1927
    %v1929 = vsub.f32 %v1922, %v1928
    %v1930 = vmul.f32 %v1929, 1.442695
    %v1931 = vpow.pop %v1930
    %v1932 = vsel %vm1925, %v1931, 0.0
    %1933 = vadd.xlane.f32.xlu0 %v1932
    %v1934 = vpop.xlane.xlu0 %1933
    %v1935 = vlog2.pop %v1934
    %v1936 = vmul.f32 %v1935, 0.6931472
    %v1937 = vadd.f32 %v1928, %v1936
    %v1938 = vsub.f32 %v1922, %v1937
    %1939 = vst.msk [vmem:[%s9] sm:$0xff] %vm1925, %v1938
    // Predicated region
    $region46: #{tpu_custom_call.1} parent=1 // pred_check
      _
    $region47: #{tpu_custom_call.1} parent=1 // pred_check_branch
      %1941 = sbr.rel (0) target = $region49
    $region48: #{tpu_custom_call.1} parent=1 // pred_region
      _
    $region49: #{tpu_custom_call.1} parent=1 // pred_fallthru
      _
    // Predicated region
    $region50: #{tpu_custom_call.1} parent=1 // pred_check
      _
    $region51: #{tpu_custom_call.1} parent=1 // pred_check_branch
      %1943 = sbr.rel (0) target = $region53
    $region52: #{tpu_custom_call.1} parent=1 // pred_region
      _
    $region53: #{tpu_custom_call.1} parent=1 // pred_fallthru
      _
    %1944 = vsyncpa [#allocation5], 1
    %1945 = vsyncpa [#allocation7], 1

</llo_original>
